<compile_context>
chip_gen: v5e
topology: v5e:2x2
jax: 0.10.0
libtpu: 0.0.40
codegen_flags: <defaults>
</compile_context>

<pallas_src>
import functools

import jax
import jax.numpy as jnp
from jax.experimental import pallas as pl
from jax.experimental.pallas import tpu as pltpu


CFG = dict(vocab=100, emb=16, hidden=32, heads=4, ffn=64, layers=2,
           max_pos=64, type_vocab=2, num_tags=20)

LANE = 128          # TPU lane width
TAG_PAD = LANE      # padded tag-logit width   (>= num_tags)
SPAN_PAD = LANE     # padded start|end width   (>= 2 * num_tags)


# ----------------------------------------------------------------------------
# Fused Pallas kernel: embeddings -> shared encoder layers -> pooler -> heads
# ----------------------------------------------------------------------------

def _tag_value_kernel(emb_ref, amask_ref, smask_ref,
                      emb_ln_g, emb_ln_b, emb_proj_w, emb_proj_b,
                      wqkv, bqkv, wo, bo, attn_ln_g, attn_ln_b,
                      ffn_w1, ffn_b1, ffn_w2, ffn_b2, ffn_ln_g, ffn_ln_b,
                      pool_w, pool_b, tags_w, tags_b, span_w, span_b,
                      tags_out_ref, span_out_ref,
                      *, n_layers, n_heads, hidden, eps):
    H = hidden
    dh = H // n_heads
    scale = 1.0 / (dh ** 0.5)

    def ln(x, g_ref, b_ref):
        # residual add is already folded into `x` by the caller
        mu = jnp.mean(x, axis=-1, keepdims=True)
        var = jnp.mean((x - mu) ** 2, axis=-1, keepdims=True)
        return (x - mu) * jax.lax.rsqrt(var + eps) * g_ref[...] + b_ref[...]

    def mm(x, w_ref, b_ref):
        # bf16 operands into the MXU, f32 accumulation, f32 bias add
        return jnp.dot(x.astype(jnp.bfloat16), w_ref[...],
                       preferred_element_type=jnp.float32) + b_ref[...]

    # ---- embeddings: LN + factorized projection E -> H ----
    x = ln(emb_ref[0].astype(jnp.float32), emb_ln_g, emb_ln_b)        # [S, E]
    x = mm(x, emb_proj_w, emb_proj_b)                                 # [S, H]

    amask = amask_ref[0].astype(jnp.float32)                          # [1, S] additive

    # ---- shared ALBERT encoder layer applied n_layers times (weight sharing) ----
    for _ in range(n_layers):
        qkv = mm(x, wqkv, bqkv)                                       # [S, 3H]
        q, k, v = qkv[:, :H], qkv[:, H:2 * H], qkv[:, 2 * H:]
        ctx_parts = []
        for h in range(n_heads):                                      # all heads in one body
            sl = slice(h * dh, (h + 1) * dh)
            qh = q[:, sl].astype(jnp.bfloat16)
            kh = k[:, sl].astype(jnp.bfloat16)
            vh = v[:, sl].astype(jnp.bfloat16)
            s = jax.lax.dot_general(qh, kh, (((1,), (1,)), ((), ())),
                                    preferred_element_type=jnp.float32) * scale
            p = jax.nn.softmax(s + amask, axis=-1)                    # f32 softmax
            ctx_parts.append(jnp.dot(p.astype(jnp.bfloat16), vh,
                                     preferred_element_type=jnp.float32))
        ctx = jnp.concatenate(ctx_parts, axis=-1)                     # [S, H]
        x = ln(x + mm(ctx, wo, bo), attn_ln_g, attn_ln_b)             # fused residual + LN
        h1 = jax.nn.gelu(mm(x, ffn_w1, ffn_b1), approximate=True)     # HF ALBERT gelu_new
        x = ln(x + mm(h1, ffn_w2, ffn_b2), ffn_ln_g, ffn_ln_b)        # fused residual + LN

    # ---- pooler (CLS token, tanh) + tag head ----
    # nn.Dropout(0.1) is identity at inference time.
    # TODO(synk): training-mode dropout (stochastic masking) not implemented.
    pooled = jnp.tanh(mm(x[0:1, :], pool_w, pool_b))                  # [1, H]
    tags_out_ref[0] = mm(pooled, tags_w, tags_b).astype(tags_out_ref.dtype)

    # ---- span heads: start|end packed on the lane axis, lane-dense store ----
    smask = smask_ref[0].astype(jnp.float32)                          # [S, 1]
    span = mm(x, span_w, span_b) + smask                              # [S, SPAN_PAD]
    span_out_ref[0] = span.astype(span_out_ref.dtype)


def tag_value_pallas(packed_weights, emb, add_mask, smask, cfg=CFG):
    B, S, E = emb.shape
    H, F = cfg["hidden"], cfg["ffn"]

    kernel = functools.partial(_tag_value_kernel,
                               n_layers=cfg["layers"], n_heads=cfg["heads"],
                               hidden=H, eps=1e-12)

    def const(*shape):   # whole-array block, fetched once (index never changes)
        return pl.BlockSpec(shape, lambda b, _n=len(shape): (0,) * _n)

    in_specs = [
        pl.BlockSpec((1, S, E), lambda b: (b, 0, 0)),    # summed embeddings
        pl.BlockSpec((1, 1, S), lambda b: (b, 0, 0)),    # additive attention mask
        pl.BlockSpec((1, S, 1), lambda b: (b, 0, 0)),    # softmax mask (column)
        const(1, E), const(1, E),                        # emb LN
        const(E, H), const(1, H),                        # emb projection
        const(H, 3 * H), const(1, 3 * H),                # fused QKV
        const(H, H), const(1, H),                        # attn output proj
        const(1, H), const(1, H),                        # attn LN
        const(H, F), const(1, F),                        # FFN up
        const(F, H), const(1, H),                        # FFN down
        const(1, H), const(1, H),                        # FFN LN
        const(H, H), const(1, H),                        # pooler
        const(H, TAG_PAD), const(1, TAG_PAD),            # tag head (lane-padded)
        const(H, SPAN_PAD), const(1, SPAN_PAD),          # start|end head (lane-padded)
    ]
    out_specs = [
        pl.BlockSpec((1, 1, TAG_PAD), lambda b: (b, 0, 0)),
        pl.BlockSpec((1, S, SPAN_PAD), lambda b: (b, 0, 0)),
    ]
    out_shape = (jax.ShapeDtypeStruct((B, 1, TAG_PAD), jnp.float32),
                 jax.ShapeDtypeStruct((B, S, SPAN_PAD), jnp.float32))

    return pl.pallas_call(
        kernel,
        out_shape=out_shape,
        grid=(B,),
        in_specs=in_specs,
        out_specs=out_specs,
        compiler_params=pltpu.CompilerParams(
            dimension_semantics=("parallel",)),       # v7x: shard batch over 2 TCs
    )(emb, add_mask, smask, *packed_weights)


# ----------------------------------------------------------------------------
# Synthetic ALBERT-mini (deterministic init) + weight packing
# ----------------------------------------------------------------------------

def init_params(key, cfg=CFG):
    std = 0.02
    names_shapes = [
        ("word_emb", (cfg["vocab"], cfg["emb"])),
        ("pos_emb", (cfg["max_pos"], cfg["emb"])),
        ("type_emb", (cfg["type_vocab"], cfg["emb"])),
        ("emb_ln_g", (cfg["emb"],)), ("emb_ln_b", (cfg["emb"],)),
        ("emb_proj_w", (cfg["emb"], cfg["hidden"])), ("emb_proj_b", (cfg["hidden"],)),
        # shared transformer layer (ALBERT weight sharing)
        ("wq", (cfg["hidden"], cfg["hidden"])), ("bq", (cfg["hidden"],)),
        ("wk", (cfg["hidden"], cfg["hidden"])), ("bk", (cfg["hidden"],)),
        ("wv", (cfg["hidden"], cfg["hidden"])), ("bv", (cfg["hidden"],)),
        ("wo", (cfg["hidden"], cfg["hidden"])), ("bo", (cfg["hidden"],)),
        ("attn_ln_g", (cfg["hidden"],)), ("attn_ln_b", (cfg["hidden"],)),
        ("ffn_w1", (cfg["hidden"], cfg["ffn"])), ("ffn_b1", (cfg["ffn"],)),
        ("ffn_w2", (cfg["ffn"], cfg["hidden"])), ("ffn_b2", (cfg["hidden"],)),
        ("ffn_ln_g", (cfg["hidden"],)), ("ffn_ln_b", (cfg["hidden"],)),
        ("pool_w", (cfg["hidden"], cfg["hidden"])), ("pool_b", (cfg["hidden"],)),
        # TagValueModel heads
        ("tags_w", (cfg["hidden"], cfg["num_tags"])), ("tags_b", (cfg["num_tags"],)),
        ("starts_w", (cfg["hidden"], cfg["num_tags"])), ("starts_b", (cfg["num_tags"],)),
        ("ends_w", (cfg["hidden"], cfg["num_tags"])), ("ends_b", (cfg["num_tags"],)),
    ]
    params = {}
    keys = jax.random.split(key, len(names_shapes))
    for k, (name, shape) in zip(keys, names_shapes):
        if name.endswith("_g"):
            params[name] = jnp.ones(shape, jnp.float32)
        elif name.endswith("_b"):
            params[name] = jnp.zeros(shape, jnp.float32)
        else:
            params[name] = std * jax.random.normal(k, shape, jnp.float32)
    return params


def pack_weights(p, cfg=CFG):
    """Fuse QKV / start|end weights, pad head N-dims to 128 lanes, bf16 matmul weights."""
    def bf(w):
        return w.astype(jnp.bfloat16)

    def row(v):
        return v.reshape(1, -1).astype(jnp.float32)

    def pad_cols(w, n):
        return jnp.pad(w, ((0, 0), (0, n - w.shape[1])))

    def pad_vec(v, n):
        return jnp.pad(v, (0, n - v.shape[0]))

    wqkv = jnp.concatenate([p["wq"], p["wk"], p["wv"]], axis=1)          # [H, 3H]
    bqkv = jnp.concatenate([p["bq"], p["bk"], p["bv"]], axis=0)          # [3H]
    tags_w = pad_cols(p["tags_w"], TAG_PAD)
    tags_b = pad_vec(p["tags_b"], TAG_PAD)
    span_w = pad_cols(jnp.concatenate([p["starts_w"], p["ends_w"]], axis=1), SPAN_PAD)
    span_b = pad_vec(jnp.concatenate([p["starts_b"], p["ends_b"]], axis=0), SPAN_PAD)

    return (
        row(p["emb_ln_g"]), row(p["emb_ln_b"]),
        bf(p["emb_proj_w"]), row(p["emb_proj_b"]),
        bf(wqkv), row(bqkv),
        bf(p["wo"]), row(p["bo"]),
        row(p["attn_ln_g"]), row(p["attn_ln_b"]),
        bf(p["ffn_w1"]), row(p["ffn_b1"]),
        bf(p["ffn_w2"]), row(p["ffn_b2"]),
        row(p["ffn_ln_g"]), row(p["ffn_ln_b"]),
        bf(p["pool_w"]), row(p["pool_b"]),
        bf(tags_w), row(tags_b),
        bf(span_w), row(span_b),
    )


# ----------------------------------------------------------------------------
# TagValueModel forward (mirrors the PyTorch module semantics)
# ----------------------------------------------------------------------------

def tag_value_forward(p, ids, type_ids, att_ids, softmax_mask=None, cfg=CFG):
    B, S = ids.shape
    T = cfg["num_tags"]

    # Mirrors the PyTorch call: attention_mask=type_ids, token_type_ids=att_ids.long()
    emb = (jnp.take(p["word_emb"], ids, axis=0)
           + p["pos_emb"][None, :S, :]
           + jnp.take(p["type_emb"], att_ids.astype(jnp.int32), axis=0))     # [B, S, E]
    add_mask = ((1.0 - type_ids.astype(jnp.float32)) * -1e9).reshape(B, 1, S)
    if softmax_mask is None:
        softmax_mask = jnp.zeros((B, S), jnp.float32)
    smask = softmax_mask.astype(jnp.float32).reshape(B, S, 1)

    tags_pad, span_pad = tag_value_pallas(pack_weights(p, cfg), emb, add_mask, smask, cfg)

    pred_tags = tags_pad[:, 0, :T]                                   # [B, T]
    # permute(0, 2, 1) of the PyTorch module: layout plumbing on the sliced slabs.
    pred_starts = span_pad[:, :, :T].transpose(0, 2, 1)              # [B, T, S]
    pred_ends = span_pad[:, :, T:2 * T].transpose(0, 2, 1)           # [B, T, S]
    return pred_tags, pred_starts, pred_ends


# ----------------------------------------------------------------------------

if __name__ == "__main__":
    key = jax.random.PRNGKey(0)
    k_param, k_ids, k_type, k_tok, k_mask = jax.random.split(key, 5)

    B, S = 2, 8
    params = init_params(k_param)

    ids = jax.random.randint(k_ids, (B, S), 0, CFG["vocab"], dtype=jnp.int32)
    type_ids = jnp.ones((B, S), jnp.int32)            # used as attention_mask
    att_ids = jax.random.randint(k_tok, (B, S), 0, CFG["type_vocab"], dtype=jnp.int32)
    softmax_mask = jnp.where(jax.random.uniform(k_mask, (B, S)) > 0.8,
                             -10000.0, 0.0).astype(jnp.float32)

    fwd = jax.jit(tag_value_forward)
    pred_tags, pred_starts, pred_ends = fwd(params, ids, type_ids, att_ids, softmax_mask)
    jax.block_until_ready((pred_tags, pred_starts, pred_ends))

    assert pred_tags.shape == (B, CFG["num_tags"])
    assert pred_starts.shape == (B, CFG["num_tags"], S)
    assert pred_ends.shape == (B, CFG["num_tags"], S)
    print("KERNEL_OK")
</pallas_src>

<mosaic_0001>
module attributes {stable_mosaic.version = 11 : i64} {
  func.func @_tag_value_kernel(%arg0: i32, %arg1: memref<1x8x16xf32, #tpu.memory_space<vmem>>, %arg2: memref<1x1x8xf32, #tpu.memory_space<vmem>>, %arg3: memref<1x8x1xf32, #tpu.memory_space<vmem>>, %arg4: memref<1x16xf32, #tpu.memory_space<vmem>>, %arg5: memref<1x16xf32, #tpu.memory_space<vmem>>, %arg6: memref<16x32xbf16, #tpu.memory_space<vmem>>, %arg7: memref<1x32xf32, #tpu.memory_space<vmem>>, %arg8: memref<32x96xbf16, #tpu.memory_space<vmem>>, %arg9: memref<1x96xf32, #tpu.memory_space<vmem>>, %arg10: memref<32x32xbf16, #tpu.memory_space<vmem>>, %arg11: memref<1x32xf32, #tpu.memory_space<vmem>>, %arg12: memref<1x32xf32, #tpu.memory_space<vmem>>, %arg13: memref<1x32xf32, #tpu.memory_space<vmem>>, %arg14: memref<32x64xbf16, #tpu.memory_space<vmem>>, %arg15: memref<1x64xf32, #tpu.memory_space<vmem>>, %arg16: memref<64x32xbf16, #tpu.memory_space<vmem>>, %arg17: memref<1x32xf32, #tpu.memory_space<vmem>>, %arg18: memref<1x32xf32, #tpu.memory_space<vmem>>, %arg19: memref<1x32xf32, #tpu.memory_space<vmem>>, %arg20: memref<32x32xbf16, #tpu.memory_space<vmem>>, %arg21: memref<1x32xf32, #tpu.memory_space<vmem>>, %arg22: memref<32x128xbf16, #tpu.memory_space<vmem>>, %arg23: memref<1x128xf32, #tpu.memory_space<vmem>>, %arg24: memref<32x128xbf16, #tpu.memory_space<vmem>>, %arg25: memref<1x128xf32, #tpu.memory_space<vmem>>, %arg26: memref<1x1x128xf32, #tpu.memory_space<vmem>>, %arg27: memref<1x8x128xf32, #tpu.memory_space<vmem>>) attributes {dimension_semantics = [#tpu.dimension_semantics<parallel>], iteration_bounds = array<i64: 2>, scalar_prefetch = 0 : i64, scratch_operands = 0 : i64, tpu.core_type = #tpu.core_type<tc>, window_params = [{transform_indices = @transform_0, window_bounds = array<i64: 1, 8, 16>}, {transform_indices = @transform_1, window_bounds = array<i64: 1, 1, 8>}, {transform_indices = @transform_2, window_bounds = array<i64: 1, 8, 1>}, {pipeline_mode = #tpu.pipeline_mode<synchronous>, transform_indices = @transform_3, window_bounds = array<i64: 1, 16>}, {pipeline_mode = #tpu.pipeline_mode<synchronous>, transform_indices = @transform_4, window_bounds = array<i64: 1, 16>}, {pipeline_mode = #tpu.pipeline_mode<synchronous>, transform_indices = @transform_5, window_bounds = array<i64: 16, 32>}, {pipeline_mode = #tpu.pipeline_mode<synchronous>, transform_indices = @transform_6, window_bounds = array<i64: 1, 32>}, {pipeline_mode = #tpu.pipeline_mode<synchronous>, transform_indices = @transform_7, window_bounds = array<i64: 32, 96>}, {pipeline_mode = #tpu.pipeline_mode<synchronous>, transform_indices = @transform_8, window_bounds = array<i64: 1, 96>}, {pipeline_mode = #tpu.pipeline_mode<synchronous>, transform_indices = @transform_9, window_bounds = array<i64: 32, 32>}, {pipeline_mode = #tpu.pipeline_mode<synchronous>, transform_indices = @transform_10, window_bounds = array<i64: 1, 32>}, {pipeline_mode = #tpu.pipeline_mode<synchronous>, transform_indices = @transform_11, window_bounds = array<i64: 1, 32>}, {pipeline_mode = #tpu.pipeline_mode<synchronous>, transform_indices = @transform_12, window_bounds = array<i64: 1, 32>}, {pipeline_mode = #tpu.pipeline_mode<synchronous>, transform_indices = @transform_13, window_bounds = array<i64: 32, 64>}, {pipeline_mode = #tpu.pipeline_mode<synchronous>, transform_indices = @transform_14, window_bounds = array<i64: 1, 64>}, {pipeline_mode = #tpu.pipeline_mode<synchronous>, transform_indices = @transform_15, window_bounds = array<i64: 64, 32>}, {pipeline_mode = #tpu.pipeline_mode<synchronous>, transform_indices = @transform_16, window_bounds = array<i64: 1, 32>}, {pipeline_mode = #tpu.pipeline_mode<synchronous>, transform_indices = @transform_17, window_bounds = array<i64: 1, 32>}, {pipeline_mode = #tpu.pipeline_mode<synchronous>, transform_indices = @transform_18, window_bounds = array<i64: 1, 32>}, {pipeline_mode = #tpu.pipeline_mode<synchronous>, transform_indices = @transform_19, window_bounds = array<i64: 32, 32>}, {pipeline_mode = #tpu.pipeline_mode<synchronous>, transform_indices = @transform_20, window_bounds = array<i64: 1, 32>}, {pipeline_mode = #tpu.pipeline_mode<synchronous>, transform_indices = @transform_21, window_bounds = array<i64: 32, 128>}, {pipeline_mode = #tpu.pipeline_mode<synchronous>, transform_indices = @transform_22, window_bounds = array<i64: 1, 128>}, {pipeline_mode = #tpu.pipeline_mode<synchronous>, transform_indices = @transform_23, window_bounds = array<i64: 32, 128>}, {pipeline_mode = #tpu.pipeline_mode<synchronous>, transform_indices = @transform_24, window_bounds = array<i64: 1, 128>}, {transform_indices = @transform_25, window_bounds = array<i64: 1, 1, 128>}, {transform_indices = @transform_26, window_bounds = array<i64: 1, 8, 128>}]} {
    %c0 = arith.constant 0 : index
    %c0_0 = arith.constant 0 : index
    %c0_1 = arith.constant 0 : index
    %0 = vector.load %arg1[%c0, %c0_0, %c0_1] : memref<1x8x16xf32, #tpu.memory_space<vmem>>, vector<1x8x16xf32>
    %1 = vector.shape_cast %0 : vector<1x8x16xf32> to vector<8x16xf32>
    %cst = arith.constant dense<0.000000e+00> : vector<8xf32>
    %2 = vector.multi_reduction <add>, %1, %cst [1] : vector<8x16xf32> to vector<8xf32>
    %3 = vector.shape_cast %2 : vector<8xf32> to vector<8x1xf32>
    %cst_2 = arith.constant 1.600000e+01 : f32
    %4 = vector.broadcast %cst_2 : f32 to vector<8x1xf32>
    %5 = arith.divf %3, %4 : vector<8x1xf32>
    %6 = vector.broadcast %5 : vector<8x1xf32> to vector<8x16xf32>
    %7 = arith.subf %1, %6 : vector<8x16xf32>
    %8 = arith.mulf %7, %7 : vector<8x16xf32>
    %cst_3 = arith.constant dense<0.000000e+00> : vector<8xf32>
    %9 = vector.multi_reduction <add>, %8, %cst_3 [1] : vector<8x16xf32> to vector<8xf32>
    %10 = vector.shape_cast %9 : vector<8xf32> to vector<8x1xf32>
    %cst_4 = arith.constant 1.600000e+01 : f32
    %11 = vector.broadcast %cst_4 : f32 to vector<8x1xf32>
    %12 = arith.divf %10, %11 : vector<8x1xf32>
    %13 = vector.broadcast %5 : vector<8x1xf32> to vector<8x16xf32>
    %14 = arith.subf %1, %13 : vector<8x16xf32>
    %cst_5 = arith.constant 9.99999996E-13 : f32
    %15 = vector.broadcast %cst_5 : f32 to vector<8x1xf32>
    %16 = arith.addf %12, %15 : vector<8x1xf32>
    %17 = math.rsqrt %16 : vector<8x1xf32>
    %18 = vector.broadcast %17 : vector<8x1xf32> to vector<8x16xf32>
    %19 = arith.mulf %14, %18 : vector<8x16xf32>
    %c0_6 = arith.constant 0 : index
    %c0_7 = arith.constant 0 : index
    %20 = vector.load %arg4[%c0_6, %c0_7] : memref<1x16xf32, #tpu.memory_space<vmem>>, vector<1x16xf32>
    %21 = vector.broadcast %20 : vector<1x16xf32> to vector<8x16xf32>
    %22 = arith.mulf %19, %21 : vector<8x16xf32>
    %c0_8 = arith.constant 0 : index
    %c0_9 = arith.constant 0 : index
    %23 = vector.load %arg5[%c0_8, %c0_9] : memref<1x16xf32, #tpu.memory_space<vmem>>, vector<1x16xf32>
    %24 = vector.broadcast %23 : vector<1x16xf32> to vector<8x16xf32>
    %25 = arith.addf %22, %24 : vector<8x16xf32>
    %26 = arith.truncf %25 : vector<8x16xf32> to vector<8x16xbf16>
    %c0_10 = arith.constant 0 : index
    %c0_11 = arith.constant 0 : index
    %27 = vector.load %arg6[%c0_10, %c0_11] : memref<16x32xbf16, #tpu.memory_space<vmem>>, vector<16x32xbf16>
    %cst_12 = arith.constant dense<0.000000e+00> : vector<8x32xf32>
    %28 = tpu.matmul %26, %27, %cst_12 {dimension_numbers = #tpu.dot_dimension_numbers<[1], [0], [0], [1], [0, 0, 1, 1], [], []>} : vector<8x16xbf16>, vector<16x32xbf16>, vector<8x32xf32> -> vector<8x32xf32>
    %c0_13 = arith.constant 0 : index
    %c0_14 = arith.constant 0 : index
    %29 = vector.load %arg7[%c0_13, %c0_14] : memref<1x32xf32, #tpu.memory_space<vmem>>, vector<1x32xf32>
    %30 = vector.broadcast %29 : vector<1x32xf32> to vector<8x32xf32>
    %31 = arith.addf %28, %30 : vector<8x32xf32>
    %c0_15 = arith.constant 0 : index
    %c0_16 = arith.constant 0 : index
    %c0_17 = arith.constant 0 : index
    %32 = vector.load %arg2[%c0_15, %c0_16, %c0_17] : memref<1x1x8xf32, #tpu.memory_space<vmem>>, vector<1x1x8xf32>
    %33 = vector.shape_cast %32 : vector<1x1x8xf32> to vector<1x8xf32>
    %34 = arith.truncf %31 : vector<8x32xf32> to vector<8x32xbf16>
    %c0_18 = arith.constant 0 : index
    %c0_19 = arith.constant 0 : index
    %35 = vector.load %arg8[%c0_18, %c0_19] : memref<32x96xbf16, #tpu.memory_space<vmem>>, vector<32x96xbf16>
    %cst_20 = arith.constant dense<0.000000e+00> : vector<8x96xf32>
    %36 = tpu.matmul %34, %35, %cst_20 {dimension_numbers = #tpu.dot_dimension_numbers<[1], [0], [0], [1], [0, 0, 1, 1], [], []>} : vector<8x32xbf16>, vector<32x96xbf16>, vector<8x96xf32> -> vector<8x96xf32>
    %c0_21 = arith.constant 0 : index
    %c0_22 = arith.constant 0 : index
    %37 = vector.load %arg9[%c0_21, %c0_22] : memref<1x96xf32, #tpu.memory_space<vmem>>, vector<1x96xf32>
    %38 = vector.broadcast %37 : vector<1x96xf32> to vector<8x96xf32>
    %39 = arith.addf %36, %38 : vector<8x96xf32>
    %40 = vector.extract_strided_slice %39 {offsets = [0, 0], sizes = [8, 32], strides = [1, 1]} : vector<8x96xf32> to vector<8x32xf32>
    %41 = vector.extract_strided_slice %39 {offsets = [0, 32], sizes = [8, 32], strides = [1, 1]} : vector<8x96xf32> to vector<8x32xf32>
    %42 = vector.extract_strided_slice %39 {offsets = [0, 64], sizes = [8, 32], strides = [1, 1]} : vector<8x96xf32> to vector<8x32xf32>
    %43 = vector.extract_strided_slice %40 {offsets = [0, 0], sizes = [8, 8], strides = [1, 1]} : vector<8x32xf32> to vector<8x8xf32>
    %44 = arith.truncf %43 : vector<8x8xf32> to vector<8x8xbf16>
    %45 = vector.extract_strided_slice %41 {offsets = [0, 0], sizes = [8, 8], strides = [1, 1]} : vector<8x32xf32> to vector<8x8xf32>
    %46 = arith.truncf %45 : vector<8x8xf32> to vector<8x8xbf16>
    %47 = vector.extract_strided_slice %42 {offsets = [0, 0], sizes = [8, 8], strides = [1, 1]} : vector<8x32xf32> to vector<8x8xf32>
    %48 = arith.truncf %47 : vector<8x8xf32> to vector<8x8xbf16>
    %cst_23 = arith.constant dense<0.000000e+00> : vector<8x8xf32>
    %49 = tpu.matmul %44, %46, %cst_23 {dimension_numbers = #tpu.dot_dimension_numbers<[1], [1], [0], [0], [0, 0, 1, 0], [], []>} : vector<8x8xbf16>, vector<8x8xbf16>, vector<8x8xf32> -> vector<8x8xf32>
    %cst_24 = arith.constant 0.353553385 : f32
    %50 = vector.broadcast %cst_24 : f32 to vector<8x8xf32>
    %51 = arith.mulf %49, %50 : vector<8x8xf32>
    %52 = vector.broadcast %33 : vector<1x8xf32> to vector<8x8xf32>
    %53 = arith.addf %51, %52 : vector<8x8xf32>
    %cst_25 = arith.constant dense<0xFF800000> : vector<8xf32>
    %54 = vector.multi_reduction <maximumf>, %53, %cst_25 [1] : vector<8x8xf32> to vector<8xf32>
    %cst_26 = arith.constant 0xFF800000 : f32
    %55 = vector.broadcast %cst_26 : f32 to vector<8xf32>
    %56 = arith.maximumf %55, %54 : vector<8xf32>
    %57 = vector.shape_cast %56 : vector<8xf32> to vector<8x1xf32>
    %58 = vector.broadcast %57 : vector<8x1xf32> to vector<8x8xf32>
    %59 = arith.subf %53, %58 : vector<8x8xf32>
    %60 = math.exp %59 : vector<8x8xf32>
    %cst_27 = arith.constant dense<0.000000e+00> : vector<8xf32>
    %61 = vector.multi_reduction <add>, %60, %cst_27 [1] : vector<8x8xf32> to vector<8xf32>
    %62 = vector.shape_cast %61 : vector<8xf32> to vector<8x1xf32>
    %63 = vector.broadcast %62 : vector<8x1xf32> to vector<8x8xf32>
    %64 = arith.divf %60, %63 : vector<8x8xf32>
    %65 = arith.truncf %64 : vector<8x8xf32> to vector<8x8xbf16>
    %cst_28 = arith.constant dense<0.000000e+00> : vector<8x8xf32>
    %66 = tpu.matmul %65, %48, %cst_28 {dimension_numbers = #tpu.dot_dimension_numbers<[1], [0], [0], [1], [0, 0, 1, 1], [], []>} : vector<8x8xbf16>, vector<8x8xbf16>, vector<8x8xf32> -> vector<8x8xf32>
    %67 = vector.extract_strided_slice %40 {offsets = [0, 8], sizes = [8, 8], strides = [1, 1]} : vector<8x32xf32> to vector<8x8xf32>
    %68 = arith.truncf %67 : vector<8x8xf32> to vector<8x8xbf16>
    %69 = vector.extract_strided_slice %41 {offsets = [0, 8], sizes = [8, 8], strides = [1, 1]} : vector<8x32xf32> to vector<8x8xf32>
    %70 = arith.truncf %69 : vector<8x8xf32> to vector<8x8xbf16>
    %71 = vector.extract_strided_slice %42 {offsets = [0, 8], sizes = [8, 8], strides = [1, 1]} : vector<8x32xf32> to vector<8x8xf32>
    %72 = arith.truncf %71 : vector<8x8xf32> to vector<8x8xbf16>
    %cst_29 = arith.constant dense<0.000000e+00> : vector<8x8xf32>
    %73 = tpu.matmul %68, %70, %cst_29 {dimension_numbers = #tpu.dot_dimension_numbers<[1], [1], [0], [0], [0, 0, 1, 0], [], []>} : vector<8x8xbf16>, vector<8x8xbf16>, vector<8x8xf32> -> vector<8x8xf32>
    %cst_30 = arith.constant 0.353553385 : f32
    %74 = vector.broadcast %cst_30 : f32 to vector<8x8xf32>
    %75 = arith.mulf %73, %74 : vector<8x8xf32>
    %76 = vector.broadcast %33 : vector<1x8xf32> to vector<8x8xf32>
    %77 = arith.addf %75, %76 : vector<8x8xf32>
    %cst_31 = arith.constant dense<0xFF800000> : vector<8xf32>
    %78 = vector.multi_reduction <maximumf>, %77, %cst_31 [1] : vector<8x8xf32> to vector<8xf32>
    %cst_32 = arith.constant 0xFF800000 : f32
    %79 = vector.broadcast %cst_32 : f32 to vector<8xf32>
    %80 = arith.maximumf %79, %78 : vector<8xf32>
    %81 = vector.shape_cast %80 : vector<8xf32> to vector<8x1xf32>
    %82 = vector.broadcast %81 : vector<8x1xf32> to vector<8x8xf32>
    %83 = arith.subf %77, %82 : vector<8x8xf32>
    %84 = math.exp %83 : vector<8x8xf32>
    %cst_33 = arith.constant dense<0.000000e+00> : vector<8xf32>
    %85 = vector.multi_reduction <add>, %84, %cst_33 [1] : vector<8x8xf32> to vector<8xf32>
    %86 = vector.shape_cast %85 : vector<8xf32> to vector<8x1xf32>
    %87 = vector.broadcast %86 : vector<8x1xf32> to vector<8x8xf32>
    %88 = arith.divf %84, %87 : vector<8x8xf32>
    %89 = arith.truncf %88 : vector<8x8xf32> to vector<8x8xbf16>
    %cst_34 = arith.constant dense<0.000000e+00> : vector<8x8xf32>
    %90 = tpu.matmul %89, %72, %cst_34 {dimension_numbers = #tpu.dot_dimension_numbers<[1], [0], [0], [1], [0, 0, 1, 1], [], []>} : vector<8x8xbf16>, vector<8x8xbf16>, vector<8x8xf32> -> vector<8x8xf32>
    %91 = vector.extract_strided_slice %40 {offsets = [0, 16], sizes = [8, 8], strides = [1, 1]} : vector<8x32xf32> to vector<8x8xf32>
    %92 = arith.truncf %91 : vector<8x8xf32> to vector<8x8xbf16>
    %93 = vector.extract_strided_slice %41 {offsets = [0, 16], sizes = [8, 8], strides = [1, 1]} : vector<8x32xf32> to vector<8x8xf32>
    %94 = arith.truncf %93 : vector<8x8xf32> to vector<8x8xbf16>
    %95 = vector.extract_strided_slice %42 {offsets = [0, 16], sizes = [8, 8], strides = [1, 1]} : vector<8x32xf32> to vector<8x8xf32>
    %96 = arith.truncf %95 : vector<8x8xf32> to vector<8x8xbf16>
    %cst_35 = arith.constant dense<0.000000e+00> : vector<8x8xf32>
    %97 = tpu.matmul %92, %94, %cst_35 {dimension_numbers = #tpu.dot_dimension_numbers<[1], [1], [0], [0], [0, 0, 1, 0], [], []>} : vector<8x8xbf16>, vector<8x8xbf16>, vector<8x8xf32> -> vector<8x8xf32>
    %cst_36 = arith.constant 0.353553385 : f32
    %98 = vector.broadcast %cst_36 : f32 to vector<8x8xf32>
    %99 = arith.mulf %97, %98 : vector<8x8xf32>
    %100 = vector.broadcast %33 : vector<1x8xf32> to vector<8x8xf32>
    %101 = arith.addf %99, %100 : vector<8x8xf32>
    %cst_37 = arith.constant dense<0xFF800000> : vector<8xf32>
    %102 = vector.multi_reduction <maximumf>, %101, %cst_37 [1] : vector<8x8xf32> to vector<8xf32>
    %cst_38 = arith.constant 0xFF800000 : f32
    %103 = vector.broadcast %cst_38 : f32 to vector<8xf32>
    %104 = arith.maximumf %103, %102 : vector<8xf32>
    %105 = vector.shape_cast %104 : vector<8xf32> to vector<8x1xf32>
    %106 = vector.broadcast %105 : vector<8x1xf32> to vector<8x8xf32>
    %107 = arith.subf %101, %106 : vector<8x8xf32>
    %108 = math.exp %107 : vector<8x8xf32>
    %cst_39 = arith.constant dense<0.000000e+00> : vector<8xf32>
    %109 = vector.multi_reduction <add>, %108, %cst_39 [1] : vector<8x8xf32> to vector<8xf32>
    %110 = vector.shape_cast %109 : vector<8xf32> to vector<8x1xf32>
    %111 = vector.broadcast %110 : vector<8x1xf32> to vector<8x8xf32>
    %112 = arith.divf %108, %111 : vector<8x8xf32>
    %113 = arith.truncf %112 : vector<8x8xf32> to vector<8x8xbf16>
    %cst_40 = arith.constant dense<0.000000e+00> : vector<8x8xf32>
    %114 = tpu.matmul %113, %96, %cst_40 {dimension_numbers = #tpu.dot_dimension_numbers<[1], [0], [0], [1], [0, 0, 1, 1], [], []>} : vector<8x8xbf16>, vector<8x8xbf16>, vector<8x8xf32> -> vector<8x8xf32>
    %115 = vector.extract_strided_slice %40 {offsets = [0, 24], sizes = [8, 8], strides = [1, 1]} : vector<8x32xf32> to vector<8x8xf32>
    %116 = arith.truncf %115 : vector<8x8xf32> to vector<8x8xbf16>
    %117 = vector.extract_strided_slice %41 {offsets = [0, 24], sizes = [8, 8], strides = [1, 1]} : vector<8x32xf32> to vector<8x8xf32>
    %118 = arith.truncf %117 : vector<8x8xf32> to vector<8x8xbf16>
    %119 = vector.extract_strided_slice %42 {offsets = [0, 24], sizes = [8, 8], strides = [1, 1]} : vector<8x32xf32> to vector<8x8xf32>
    %120 = arith.truncf %119 : vector<8x8xf32> to vector<8x8xbf16>
    %cst_41 = arith.constant dense<0.000000e+00> : vector<8x8xf32>
    %121 = tpu.matmul %116, %118, %cst_41 {dimension_numbers = #tpu.dot_dimension_numbers<[1], [1], [0], [0], [0, 0, 1, 0], [], []>} : vector<8x8xbf16>, vector<8x8xbf16>, vector<8x8xf32> -> vector<8x8xf32>
    %cst_42 = arith.constant 0.353553385 : f32
    %122 = vector.broadcast %cst_42 : f32 to vector<8x8xf32>
    %123 = arith.mulf %121, %122 : vector<8x8xf32>
    %124 = vector.broadcast %33 : vector<1x8xf32> to vector<8x8xf32>
    %125 = arith.addf %123, %124 : vector<8x8xf32>
    %cst_43 = arith.constant dense<0xFF800000> : vector<8xf32>
    %126 = vector.multi_reduction <maximumf>, %125, %cst_43 [1] : vector<8x8xf32> to vector<8xf32>
    %cst_44 = arith.constant 0xFF800000 : f32
    %127 = vector.broadcast %cst_44 : f32 to vector<8xf32>
    %128 = arith.maximumf %127, %126 : vector<8xf32>
    %129 = vector.shape_cast %128 : vector<8xf32> to vector<8x1xf32>
    %130 = vector.broadcast %129 : vector<8x1xf32> to vector<8x8xf32>
    %131 = arith.subf %125, %130 : vector<8x8xf32>
    %132 = math.exp %131 : vector<8x8xf32>
    %cst_45 = arith.constant dense<0.000000e+00> : vector<8xf32>
    %133 = vector.multi_reduction <add>, %132, %cst_45 [1] : vector<8x8xf32> to vector<8xf32>
    %134 = vector.shape_cast %133 : vector<8xf32> to vector<8x1xf32>
    %135 = vector.broadcast %134 : vector<8x1xf32> to vector<8x8xf32>
    %136 = arith.divf %132, %135 : vector<8x8xf32>
    %137 = arith.truncf %136 : vector<8x8xf32> to vector<8x8xbf16>
    %cst_46 = arith.constant dense<0.000000e+00> : vector<8x8xf32>
    %138 = tpu.matmul %137, %120, %cst_46 {dimension_numbers = #tpu.dot_dimension_numbers<[1], [0], [0], [1], [0, 0, 1, 1], [], []>} : vector<8x8xbf16>, vector<8x8xbf16>, vector<8x8xf32> -> vector<8x8xf32>
    %139 = tpu.concatenate %66, %90, %114, %138 in 1 : vector<8x8xf32>, vector<8x8xf32>, vector<8x8xf32>, vector<8x8xf32> -> vector<8x32xf32>
    %140 = arith.truncf %139 : vector<8x32xf32> to vector<8x32xbf16>
    %c0_47 = arith.constant 0 : index
    %c0_48 = arith.constant 0 : index
    %141 = vector.load %arg10[%c0_47, %c0_48] : memref<32x32xbf16, #tpu.memory_space<vmem>>, vector<32x32xbf16>
    %cst_49 = arith.constant dense<0.000000e+00> : vector<8x32xf32>
    %142 = tpu.matmul %140, %141, %cst_49 {dimension_numbers = #tpu.dot_dimension_numbers<[1], [0], [0], [1], [0, 0, 1, 1], [], []>} : vector<8x32xbf16>, vector<32x32xbf16>, vector<8x32xf32> -> vector<8x32xf32>
    %c0_50 = arith.constant 0 : index
    %c0_51 = arith.constant 0 : index
    %143 = vector.load %arg11[%c0_50, %c0_51] : memref<1x32xf32, #tpu.memory_space<vmem>>, vector<1x32xf32>
    %144 = vector.broadcast %143 : vector<1x32xf32> to vector<8x32xf32>
    %145 = arith.addf %142, %144 : vector<8x32xf32>
    %146 = arith.addf %31, %145 : vector<8x32xf32>
    %cst_52 = arith.constant dense<0.000000e+00> : vector<8xf32>
    %147 = vector.multi_reduction <add>, %146, %cst_52 [1] : vector<8x32xf32> to vector<8xf32>
    %148 = vector.shape_cast %147 : vector<8xf32> to vector<8x1xf32>
    %cst_53 = arith.constant 3.200000e+01 : f32
    %149 = vector.broadcast %cst_53 : f32 to vector<8x1xf32>
    %150 = arith.divf %148, %149 : vector<8x1xf32>
    %151 = vector.broadcast %150 : vector<8x1xf32> to vector<8x32xf32>
    %152 = arith.subf %146, %151 : vector<8x32xf32>
    %153 = arith.mulf %152, %152 : vector<8x32xf32>
    %cst_54 = arith.constant dense<0.000000e+00> : vector<8xf32>
    %154 = vector.multi_reduction <add>, %153, %cst_54 [1] : vector<8x32xf32> to vector<8xf32>
    %155 = vector.shape_cast %154 : vector<8xf32> to vector<8x1xf32>
    %cst_55 = arith.constant 3.200000e+01 : f32
    %156 = vector.broadcast %cst_55 : f32 to vector<8x1xf32>
    %157 = arith.divf %155, %156 : vector<8x1xf32>
    %158 = vector.broadcast %150 : vector<8x1xf32> to vector<8x32xf32>
    %159 = arith.subf %146, %158 : vector<8x32xf32>
    %cst_56 = arith.constant 9.99999996E-13 : f32
    %160 = vector.broadcast %cst_56 : f32 to vector<8x1xf32>
    %161 = arith.addf %157, %160 : vector<8x1xf32>
    %162 = math.rsqrt %161 : vector<8x1xf32>
    %163 = vector.broadcast %162 : vector<8x1xf32> to vector<8x32xf32>
    %164 = arith.mulf %159, %163 : vector<8x32xf32>
    %c0_57 = arith.constant 0 : index
    %c0_58 = arith.constant 0 : index
    %165 = vector.load %arg12[%c0_57, %c0_58] : memref<1x32xf32, #tpu.memory_space<vmem>>, vector<1x32xf32>
    %166 = vector.broadcast %165 : vector<1x32xf32> to vector<8x32xf32>
    %167 = arith.mulf %164, %166 : vector<8x32xf32>
    %c0_59 = arith.constant 0 : index
    %c0_60 = arith.constant 0 : index
    %168 = vector.load %arg13[%c0_59, %c0_60] : memref<1x32xf32, #tpu.memory_space<vmem>>, vector<1x32xf32>
    %169 = vector.broadcast %168 : vector<1x32xf32> to vector<8x32xf32>
    %170 = arith.addf %167, %169 : vector<8x32xf32>
    %171 = arith.truncf %170 : vector<8x32xf32> to vector<8x32xbf16>
    %c0_61 = arith.constant 0 : index
    %c0_62 = arith.constant 0 : index
    %172 = vector.load %arg14[%c0_61, %c0_62] : memref<32x64xbf16, #tpu.memory_space<vmem>>, vector<32x64xbf16>
    %cst_63 = arith.constant dense<0.000000e+00> : vector<8x64xf32>
    %173 = tpu.matmul %171, %172, %cst_63 {dimension_numbers = #tpu.dot_dimension_numbers<[1], [0], [0], [1], [0, 0, 1, 1], [], []>} : vector<8x32xbf16>, vector<32x64xbf16>, vector<8x64xf32> -> vector<8x64xf32>
    %c0_64 = arith.constant 0 : index
    %c0_65 = arith.constant 0 : index
    %174 = vector.load %arg15[%c0_64, %c0_65] : memref<1x64xf32, #tpu.memory_space<vmem>>, vector<1x64xf32>
    %175 = vector.broadcast %174 : vector<1x64xf32> to vector<8x64xf32>
    %176 = arith.addf %173, %175 : vector<8x64xf32>
    %177 = arith.mulf %176, %176 : vector<8x64xf32>
    %178 = arith.mulf %176, %177 : vector<8x64xf32>
    %cst_66 = arith.constant 4.471500e-02 : f32
    %179 = vector.broadcast %cst_66 : f32 to vector<8x64xf32>
    %180 = arith.mulf %179, %178 : vector<8x64xf32>
    %181 = arith.addf %176, %180 : vector<8x64xf32>
    %cst_67 = arith.constant 0.797884583 : f32
    %182 = vector.broadcast %cst_67 : f32 to vector<8x64xf32>
    %183 = arith.mulf %182, %181 : vector<8x64xf32>
    %184 = math.tanh %183 : vector<8x64xf32>
    %cst_68 = arith.constant 1.000000e+00 : f32
    %185 = vector.broadcast %cst_68 : f32 to vector<8x64xf32>
    %186 = arith.addf %185, %184 : vector<8x64xf32>
    %cst_69 = arith.constant 5.000000e-01 : f32
    %187 = vector.broadcast %cst_69 : f32 to vector<8x64xf32>
    %188 = arith.mulf %187, %186 : vector<8x64xf32>
    %189 = arith.mulf %176, %188 : vector<8x64xf32>
    %190 = arith.truncf %189 : vector<8x64xf32> to vector<8x64xbf16>
    %c0_70 = arith.constant 0 : index
    %c0_71 = arith.constant 0 : index
    %191 = vector.load %arg16[%c0_70, %c0_71] : memref<64x32xbf16, #tpu.memory_space<vmem>>, vector<64x32xbf16>
    %cst_72 = arith.constant dense<0.000000e+00> : vector<8x32xf32>
    %192 = tpu.matmul %190, %191, %cst_72 {dimension_numbers = #tpu.dot_dimension_numbers<[1], [0], [0], [1], [0, 0, 1, 1], [], []>} : vector<8x64xbf16>, vector<64x32xbf16>, vector<8x32xf32> -> vector<8x32xf32>
    %c0_73 = arith.constant 0 : index
    %c0_74 = arith.constant 0 : index
    %193 = vector.load %arg17[%c0_73, %c0_74] : memref<1x32xf32, #tpu.memory_space<vmem>>, vector<1x32xf32>
    %194 = vector.broadcast %193 : vector<1x32xf32> to vector<8x32xf32>
    %195 = arith.addf %192, %194 : vector<8x32xf32>
    %196 = arith.addf %170, %195 : vector<8x32xf32>
    %cst_75 = arith.constant dense<0.000000e+00> : vector<8xf32>
    %197 = vector.multi_reduction <add>, %196, %cst_75 [1] : vector<8x32xf32> to vector<8xf32>
    %198 = vector.shape_cast %197 : vector<8xf32> to vector<8x1xf32>
    %cst_76 = arith.constant 3.200000e+01 : f32
    %199 = vector.broadcast %cst_76 : f32 to vector<8x1xf32>
    %200 = arith.divf %198, %199 : vector<8x1xf32>
    %201 = vector.broadcast %200 : vector<8x1xf32> to vector<8x32xf32>
    %202 = arith.subf %196, %201 : vector<8x32xf32>
    %203 = arith.mulf %202, %202 : vector<8x32xf32>
    %cst_77 = arith.constant dense<0.000000e+00> : vector<8xf32>
    %204 = vector.multi_reduction <add>, %203, %cst_77 [1] : vector<8x32xf32> to vector<8xf32>
    %205 = vector.shape_cast %204 : vector<8xf32> to vector<8x1xf32>
    %cst_78 = arith.constant 3.200000e+01 : f32
    %206 = vector.broadcast %cst_78 : f32 to vector<8x1xf32>
    %207 = arith.divf %205, %206 : vector<8x1xf32>
    %208 = vector.broadcast %200 : vector<8x1xf32> to vector<8x32xf32>
    %209 = arith.subf %196, %208 : vector<8x32xf32>
    %cst_79 = arith.constant 9.99999996E-13 : f32
    %210 = vector.broadcast %cst_79 : f32 to vector<8x1xf32>
    %211 = arith.addf %207, %210 : vector<8x1xf32>
    %212 = math.rsqrt %211 : vector<8x1xf32>
    %213 = vector.broadcast %212 : vector<8x1xf32> to vector<8x32xf32>
    %214 = arith.mulf %209, %213 : vector<8x32xf32>
    %c0_80 = arith.constant 0 : index
    %c0_81 = arith.constant 0 : index
    %215 = vector.load %arg18[%c0_80, %c0_81] : memref<1x32xf32, #tpu.memory_space<vmem>>, vector<1x32xf32>
    %216 = vector.broadcast %215 : vector<1x32xf32> to vector<8x32xf32>
    %217 = arith.mulf %214, %216 : vector<8x32xf32>
    %c0_82 = arith.constant 0 : index
    %c0_83 = arith.constant 0 : index
    %218 = vector.load %arg19[%c0_82, %c0_83] : memref<1x32xf32, #tpu.memory_space<vmem>>, vector<1x32xf32>
    %219 = vector.broadcast %218 : vector<1x32xf32> to vector<8x32xf32>
    %220 = arith.addf %217, %219 : vector<8x32xf32>
    %221 = arith.truncf %220 : vector<8x32xf32> to vector<8x32xbf16>
    %c0_84 = arith.constant 0 : index
    %c0_85 = arith.constant 0 : index
    %222 = vector.load %arg8[%c0_84, %c0_85] : memref<32x96xbf16, #tpu.memory_space<vmem>>, vector<32x96xbf16>
    %cst_86 = arith.constant dense<0.000000e+00> : vector<8x96xf32>
    %223 = tpu.matmul %221, %222, %cst_86 {dimension_numbers = #tpu.dot_dimension_numbers<[1], [0], [0], [1], [0, 0, 1, 1], [], []>} : vector<8x32xbf16>, vector<32x96xbf16>, vector<8x96xf32> -> vector<8x96xf32>
    %c0_87 = arith.constant 0 : index
    %c0_88 = arith.constant 0 : index
    %224 = vector.load %arg9[%c0_87, %c0_88] : memref<1x96xf32, #tpu.memory_space<vmem>>, vector<1x96xf32>
    %225 = vector.broadcast %224 : vector<1x96xf32> to vector<8x96xf32>
    %226 = arith.addf %223, %225 : vector<8x96xf32>
    %227 = vector.extract_strided_slice %226 {offsets = [0, 0], sizes = [8, 32], strides = [1, 1]} : vector<8x96xf32> to vector<8x32xf32>
    %228 = vector.extract_strided_slice %226 {offsets = [0, 32], sizes = [8, 32], strides = [1, 1]} : vector<8x96xf32> to vector<8x32xf32>
    %229 = vector.extract_strided_slice %226 {offsets = [0, 64], sizes = [8, 32], strides = [1, 1]} : vector<8x96xf32> to vector<8x32xf32>
    %230 = vector.extract_strided_slice %227 {offsets = [0, 0], sizes = [8, 8], strides = [1, 1]} : vector<8x32xf32> to vector<8x8xf32>
    %231 = arith.truncf %230 : vector<8x8xf32> to vector<8x8xbf16>
    %232 = vector.extract_strided_slice %228 {offsets = [0, 0], sizes = [8, 8], strides = [1, 1]} : vector<8x32xf32> to vector<8x8xf32>
    %233 = arith.truncf %232 : vector<8x8xf32> to vector<8x8xbf16>
    %234 = vector.extract_strided_slice %229 {offsets = [0, 0], sizes = [8, 8], strides = [1, 1]} : vector<8x32xf32> to vector<8x8xf32>
    %235 = arith.truncf %234 : vector<8x8xf32> to vector<8x8xbf16>
    %cst_89 = arith.constant dense<0.000000e+00> : vector<8x8xf32>
    %236 = tpu.matmul %231, %233, %cst_89 {dimension_numbers = #tpu.dot_dimension_numbers<[1], [1], [0], [0], [0, 0, 1, 0], [], []>} : vector<8x8xbf16>, vector<8x8xbf16>, vector<8x8xf32> -> vector<8x8xf32>
    %cst_90 = arith.constant 0.353553385 : f32
    %237 = vector.broadcast %cst_90 : f32 to vector<8x8xf32>
    %238 = arith.mulf %236, %237 : vector<8x8xf32>
    %239 = vector.broadcast %33 : vector<1x8xf32> to vector<8x8xf32>
    %240 = arith.addf %238, %239 : vector<8x8xf32>
    %cst_91 = arith.constant dense<0xFF800000> : vector<8xf32>
    %241 = vector.multi_reduction <maximumf>, %240, %cst_91 [1] : vector<8x8xf32> to vector<8xf32>
    %cst_92 = arith.constant 0xFF800000 : f32
    %242 = vector.broadcast %cst_92 : f32 to vector<8xf32>
    %243 = arith.maximumf %242, %241 : vector<8xf32>
    %244 = vector.shape_cast %243 : vector<8xf32> to vector<8x1xf32>
    %245 = vector.broadcast %244 : vector<8x1xf32> to vector<8x8xf32>
    %246 = arith.subf %240, %245 : vector<8x8xf32>
    %247 = math.exp %246 : vector<8x8xf32>
    %cst_93 = arith.constant dense<0.000000e+00> : vector<8xf32>
    %248 = vector.multi_reduction <add>, %247, %cst_93 [1] : vector<8x8xf32> to vector<8xf32>
    %249 = vector.shape_cast %248 : vector<8xf32> to vector<8x1xf32>
    %250 = vector.broadcast %249 : vector<8x1xf32> to vector<8x8xf32>
    %251 = arith.divf %247, %250 : vector<8x8xf32>
    %252 = arith.truncf %251 : vector<8x8xf32> to vector<8x8xbf16>
    %cst_94 = arith.constant dense<0.000000e+00> : vector<8x8xf32>
    %253 = tpu.matmul %252, %235, %cst_94 {dimension_numbers = #tpu.dot_dimension_numbers<[1], [0], [0], [1], [0, 0, 1, 1], [], []>} : vector<8x8xbf16>, vector<8x8xbf16>, vector<8x8xf32> -> vector<8x8xf32>
    %254 = vector.extract_strided_slice %227 {offsets = [0, 8], sizes = [8, 8], strides = [1, 1]} : vector<8x32xf32> to vector<8x8xf32>
    %255 = arith.truncf %254 : vector<8x8xf32> to vector<8x8xbf16>
    %256 = vector.extract_strided_slice %228 {offsets = [0, 8], sizes = [8, 8], strides = [1, 1]} : vector<8x32xf32> to vector<8x8xf32>
    %257 = arith.truncf %256 : vector<8x8xf32> to vector<8x8xbf16>
    %258 = vector.extract_strided_slice %229 {offsets = [0, 8], sizes = [8, 8], strides = [1, 1]} : vector<8x32xf32> to vector<8x8xf32>
    %259 = arith.truncf %258 : vector<8x8xf32> to vector<8x8xbf16>
    %cst_95 = arith.constant dense<0.000000e+00> : vector<8x8xf32>
    %260 = tpu.matmul %255, %257, %cst_95 {dimension_numbers = #tpu.dot_dimension_numbers<[1], [1], [0], [0], [0, 0, 1, 0], [], []>} : vector<8x8xbf16>, vector<8x8xbf16>, vector<8x8xf32> -> vector<8x8xf32>
    %cst_96 = arith.constant 0.353553385 : f32
    %261 = vector.broadcast %cst_96 : f32 to vector<8x8xf32>
    %262 = arith.mulf %260, %261 : vector<8x8xf32>
    %263 = vector.broadcast %33 : vector<1x8xf32> to vector<8x8xf32>
    %264 = arith.addf %262, %263 : vector<8x8xf32>
    %cst_97 = arith.constant dense<0xFF800000> : vector<8xf32>
    %265 = vector.multi_reduction <maximumf>, %264, %cst_97 [1] : vector<8x8xf32> to vector<8xf32>
    %cst_98 = arith.constant 0xFF800000 : f32
    %266 = vector.broadcast %cst_98 : f32 to vector<8xf32>
    %267 = arith.maximumf %266, %265 : vector<8xf32>
    %268 = vector.shape_cast %267 : vector<8xf32> to vector<8x1xf32>
    %269 = vector.broadcast %268 : vector<8x1xf32> to vector<8x8xf32>
    %270 = arith.subf %264, %269 : vector<8x8xf32>
    %271 = math.exp %270 : vector<8x8xf32>
    %cst_99 = arith.constant dense<0.000000e+00> : vector<8xf32>
    %272 = vector.multi_reduction <add>, %271, %cst_99 [1] : vector<8x8xf32> to vector<8xf32>
    %273 = vector.shape_cast %272 : vector<8xf32> to vector<8x1xf32>
    %274 = vector.broadcast %273 : vector<8x1xf32> to vector<8x8xf32>
    %275 = arith.divf %271, %274 : vector<8x8xf32>
    %276 = arith.truncf %275 : vector<8x8xf32> to vector<8x8xbf16>
    %cst_100 = arith.constant dense<0.000000e+00> : vector<8x8xf32>
    %277 = tpu.matmul %276, %259, %cst_100 {dimension_numbers = #tpu.dot_dimension_numbers<[1], [0], [0], [1], [0, 0, 1, 1], [], []>} : vector<8x8xbf16>, vector<8x8xbf16>, vector<8x8xf32> -> vector<8x8xf32>
    %278 = vector.extract_strided_slice %227 {offsets = [0, 16], sizes = [8, 8], strides = [1, 1]} : vector<8x32xf32> to vector<8x8xf32>
    %279 = arith.truncf %278 : vector<8x8xf32> to vector<8x8xbf16>
    %280 = vector.extract_strided_slice %228 {offsets = [0, 16], sizes = [8, 8], strides = [1, 1]} : vector<8x32xf32> to vector<8x8xf32>
    %281 = arith.truncf %280 : vector<8x8xf32> to vector<8x8xbf16>
    %282 = vector.extract_strided_slice %229 {offsets = [0, 16], sizes = [8, 8], strides = [1, 1]} : vector<8x32xf32> to vector<8x8xf32>
    %283 = arith.truncf %282 : vector<8x8xf32> to vector<8x8xbf16>
    %cst_101 = arith.constant dense<0.000000e+00> : vector<8x8xf32>
    %284 = tpu.matmul %279, %281, %cst_101 {dimension_numbers = #tpu.dot_dimension_numbers<[1], [1], [0], [0], [0, 0, 1, 0], [], []>} : vector<8x8xbf16>, vector<8x8xbf16>, vector<8x8xf32> -> vector<8x8xf32>
    %cst_102 = arith.constant 0.353553385 : f32
    %285 = vector.broadcast %cst_102 : f32 to vector<8x8xf32>
    %286 = arith.mulf %284, %285 : vector<8x8xf32>
    %287 = vector.broadcast %33 : vector<1x8xf32> to vector<8x8xf32>
    %288 = arith.addf %286, %287 : vector<8x8xf32>
    %cst_103 = arith.constant dense<0xFF800000> : vector<8xf32>
    %289 = vector.multi_reduction <maximumf>, %288, %cst_103 [1] : vector<8x8xf32> to vector<8xf32>
    %cst_104 = arith.constant 0xFF800000 : f32
    %290 = vector.broadcast %cst_104 : f32 to vector<8xf32>
    %291 = arith.maximumf %290, %289 : vector<8xf32>
    %292 = vector.shape_cast %291 : vector<8xf32> to vector<8x1xf32>
    %293 = vector.broadcast %292 : vector<8x1xf32> to vector<8x8xf32>
    %294 = arith.subf %288, %293 : vector<8x8xf32>
    %295 = math.exp %294 : vector<8x8xf32>
    %cst_105 = arith.constant dense<0.000000e+00> : vector<8xf32>
    %296 = vector.multi_reduction <add>, %295, %cst_105 [1] : vector<8x8xf32> to vector<8xf32>
    %297 = vector.shape_cast %296 : vector<8xf32> to vector<8x1xf32>
    %298 = vector.broadcast %297 : vector<8x1xf32> to vector<8x8xf32>
    %299 = arith.divf %295, %298 : vector<8x8xf32>
    %300 = arith.truncf %299 : vector<8x8xf32> to vector<8x8xbf16>
    %cst_106 = arith.constant dense<0.000000e+00> : vector<8x8xf32>
    %301 = tpu.matmul %300, %283, %cst_106 {dimension_numbers = #tpu.dot_dimension_numbers<[1], [0], [0], [1], [0, 0, 1, 1], [], []>} : vector<8x8xbf16>, vector<8x8xbf16>, vector<8x8xf32> -> vector<8x8xf32>
    %302 = vector.extract_strided_slice %227 {offsets = [0, 24], sizes = [8, 8], strides = [1, 1]} : vector<8x32xf32> to vector<8x8xf32>
    %303 = arith.truncf %302 : vector<8x8xf32> to vector<8x8xbf16>
    %304 = vector.extract_strided_slice %228 {offsets = [0, 24], sizes = [8, 8], strides = [1, 1]} : vector<8x32xf32> to vector<8x8xf32>
    %305 = arith.truncf %304 : vector<8x8xf32> to vector<8x8xbf16>
    %306 = vector.extract_strided_slice %229 {offsets = [0, 24], sizes = [8, 8], strides = [1, 1]} : vector<8x32xf32> to vector<8x8xf32>
    %307 = arith.truncf %306 : vector<8x8xf32> to vector<8x8xbf16>
    %cst_107 = arith.constant dense<0.000000e+00> : vector<8x8xf32>
    %308 = tpu.matmul %303, %305, %cst_107 {dimension_numbers = #tpu.dot_dimension_numbers<[1], [1], [0], [0], [0, 0, 1, 0], [], []>} : vector<8x8xbf16>, vector<8x8xbf16>, vector<8x8xf32> -> vector<8x8xf32>
    %cst_108 = arith.constant 0.353553385 : f32
    %309 = vector.broadcast %cst_108 : f32 to vector<8x8xf32>
    %310 = arith.mulf %308, %309 : vector<8x8xf32>
    %311 = vector.broadcast %33 : vector<1x8xf32> to vector<8x8xf32>
    %312 = arith.addf %310, %311 : vector<8x8xf32>
    %cst_109 = arith.constant dense<0xFF800000> : vector<8xf32>
    %313 = vector.multi_reduction <maximumf>, %312, %cst_109 [1] : vector<8x8xf32> to vector<8xf32>
    %cst_110 = arith.constant 0xFF800000 : f32
    %314 = vector.broadcast %cst_110 : f32 to vector<8xf32>
    %315 = arith.maximumf %314, %313 : vector<8xf32>
    %316 = vector.shape_cast %315 : vector<8xf32> to vector<8x1xf32>
    %317 = vector.broadcast %316 : vector<8x1xf32> to vector<8x8xf32>
    %318 = arith.subf %312, %317 : vector<8x8xf32>
    %319 = math.exp %318 : vector<8x8xf32>
    %cst_111 = arith.constant dense<0.000000e+00> : vector<8xf32>
    %320 = vector.multi_reduction <add>, %319, %cst_111 [1] : vector<8x8xf32> to vector<8xf32>
    %321 = vector.shape_cast %320 : vector<8xf32> to vector<8x1xf32>
    %322 = vector.broadcast %321 : vector<8x1xf32> to vector<8x8xf32>
    %323 = arith.divf %319, %322 : vector<8x8xf32>
    %324 = arith.truncf %323 : vector<8x8xf32> to vector<8x8xbf16>
    %cst_112 = arith.constant dense<0.000000e+00> : vector<8x8xf32>
    %325 = tpu.matmul %324, %307, %cst_112 {dimension_numbers = #tpu.dot_dimension_numbers<[1], [0], [0], [1], [0, 0, 1, 1], [], []>} : vector<8x8xbf16>, vector<8x8xbf16>, vector<8x8xf32> -> vector<8x8xf32>
    %326 = tpu.concatenate %253, %277, %301, %325 in 1 : vector<8x8xf32>, vector<8x8xf32>, vector<8x8xf32>, vector<8x8xf32> -> vector<8x32xf32>
    %327 = arith.truncf %326 : vector<8x32xf32> to vector<8x32xbf16>
    %c0_113 = arith.constant 0 : index
    %c0_114 = arith.constant 0 : index
    %328 = vector.load %arg10[%c0_113, %c0_114] : memref<32x32xbf16, #tpu.memory_space<vmem>>, vector<32x32xbf16>
    %cst_115 = arith.constant dense<0.000000e+00> : vector<8x32xf32>
    %329 = tpu.matmul %327, %328, %cst_115 {dimension_numbers = #tpu.dot_dimension_numbers<[1], [0], [0], [1], [0, 0, 1, 1], [], []>} : vector<8x32xbf16>, vector<32x32xbf16>, vector<8x32xf32> -> vector<8x32xf32>
    %c0_116 = arith.constant 0 : index
    %c0_117 = arith.constant 0 : index
    %330 = vector.load %arg11[%c0_116, %c0_117] : memref<1x32xf32, #tpu.memory_space<vmem>>, vector<1x32xf32>
    %331 = vector.broadcast %330 : vector<1x32xf32> to vector<8x32xf32>
    %332 = arith.addf %329, %331 : vector<8x32xf32>
    %333 = arith.addf %220, %332 : vector<8x32xf32>
    %cst_118 = arith.constant dense<0.000000e+00> : vector<8xf32>
    %334 = vector.multi_reduction <add>, %333, %cst_118 [1] : vector<8x32xf32> to vector<8xf32>
    %335 = vector.shape_cast %334 : vector<8xf32> to vector<8x1xf32>
    %cst_119 = arith.constant 3.200000e+01 : f32
    %336 = vector.broadcast %cst_119 : f32 to vector<8x1xf32>
    %337 = arith.divf %335, %336 : vector<8x1xf32>
    %338 = vector.broadcast %337 : vector<8x1xf32> to vector<8x32xf32>
    %339 = arith.subf %333, %338 : vector<8x32xf32>
    %340 = arith.mulf %339, %339 : vector<8x32xf32>
    %cst_120 = arith.constant dense<0.000000e+00> : vector<8xf32>
    %341 = vector.multi_reduction <add>, %340, %cst_120 [1] : vector<8x32xf32> to vector<8xf32>
    %342 = vector.shape_cast %341 : vector<8xf32> to vector<8x1xf32>
    %cst_121 = arith.constant 3.200000e+01 : f32
    %343 = vector.broadcast %cst_121 : f32 to vector<8x1xf32>
    %344 = arith.divf %342, %343 : vector<8x1xf32>
    %345 = vector.broadcast %337 : vector<8x1xf32> to vector<8x32xf32>
    %346 = arith.subf %333, %345 : vector<8x32xf32>
    %cst_122 = arith.constant 9.99999996E-13 : f32
    %347 = vector.broadcast %cst_122 : f32 to vector<8x1xf32>
    %348 = arith.addf %344, %347 : vector<8x1xf32>
    %349 = math.rsqrt %348 : vector<8x1xf32>
    %350 = vector.broadcast %349 : vector<8x1xf32> to vector<8x32xf32>
    %351 = arith.mulf %346, %350 : vector<8x32xf32>
    %c0_123 = arith.constant 0 : index
    %c0_124 = arith.constant 0 : index
    %352 = vector.load %arg12[%c0_123, %c0_124] : memref<1x32xf32, #tpu.memory_space<vmem>>, vector<1x32xf32>
    %353 = vector.broadcast %352 : vector<1x32xf32> to vector<8x32xf32>
    %354 = arith.mulf %351, %353 : vector<8x32xf32>
    %c0_125 = arith.constant 0 : index
    %c0_126 = arith.constant 0 : index
    %355 = vector.load %arg13[%c0_125, %c0_126] : memref<1x32xf32, #tpu.memory_space<vmem>>, vector<1x32xf32>
    %356 = vector.broadcast %355 : vector<1x32xf32> to vector<8x32xf32>
    %357 = arith.addf %354, %356 : vector<8x32xf32>
    %358 = arith.truncf %357 : vector<8x32xf32> to vector<8x32xbf16>
    %c0_127 = arith.constant 0 : index
    %c0_128 = arith.constant 0 : index
    %359 = vector.load %arg14[%c0_127, %c0_128] : memref<32x64xbf16, #tpu.memory_space<vmem>>, vector<32x64xbf16>
    %cst_129 = arith.constant dense<0.000000e+00> : vector<8x64xf32>
    %360 = tpu.matmul %358, %359, %cst_129 {dimension_numbers = #tpu.dot_dimension_numbers<[1], [0], [0], [1], [0, 0, 1, 1], [], []>} : vector<8x32xbf16>, vector<32x64xbf16>, vector<8x64xf32> -> vector<8x64xf32>
    %c0_130 = arith.constant 0 : index
    %c0_131 = arith.constant 0 : index
    %361 = vector.load %arg15[%c0_130, %c0_131] : memref<1x64xf32, #tpu.memory_space<vmem>>, vector<1x64xf32>
    %362 = vector.broadcast %361 : vector<1x64xf32> to vector<8x64xf32>
    %363 = arith.addf %360, %362 : vector<8x64xf32>
    %364 = arith.mulf %363, %363 : vector<8x64xf32>
    %365 = arith.mulf %363, %364 : vector<8x64xf32>
    %cst_132 = arith.constant 4.471500e-02 : f32
    %366 = vector.broadcast %cst_132 : f32 to vector<8x64xf32>
    %367 = arith.mulf %366, %365 : vector<8x64xf32>
    %368 = arith.addf %363, %367 : vector<8x64xf32>
    %cst_133 = arith.constant 0.797884583 : f32
    %369 = vector.broadcast %cst_133 : f32 to vector<8x64xf32>
    %370 = arith.mulf %369, %368 : vector<8x64xf32>
    %371 = math.tanh %370 : vector<8x64xf32>
    %cst_134 = arith.constant 1.000000e+00 : f32
    %372 = vector.broadcast %cst_134 : f32 to vector<8x64xf32>
    %373 = arith.addf %372, %371 : vector<8x64xf32>
    %cst_135 = arith.constant 5.000000e-01 : f32
    %374 = vector.broadcast %cst_135 : f32 to vector<8x64xf32>
    %375 = arith.mulf %374, %373 : vector<8x64xf32>
    %376 = arith.mulf %363, %375 : vector<8x64xf32>
    %377 = arith.truncf %376 : vector<8x64xf32> to vector<8x64xbf16>
    %c0_136 = arith.constant 0 : index
    %c0_137 = arith.constant 0 : index
    %378 = vector.load %arg16[%c0_136, %c0_137] : memref<64x32xbf16, #tpu.memory_space<vmem>>, vector<64x32xbf16>
    %cst_138 = arith.constant dense<0.000000e+00> : vector<8x32xf32>
    %379 = tpu.matmul %377, %378, %cst_138 {dimension_numbers = #tpu.dot_dimension_numbers<[1], [0], [0], [1], [0, 0, 1, 1], [], []>} : vector<8x64xbf16>, vector<64x32xbf16>, vector<8x32xf32> -> vector<8x32xf32>
    %c0_139 = arith.constant 0 : index
    %c0_140 = arith.constant 0 : index
    %380 = vector.load %arg17[%c0_139, %c0_140] : memref<1x32xf32, #tpu.memory_space<vmem>>, vector<1x32xf32>
    %381 = vector.broadcast %380 : vector<1x32xf32> to vector<8x32xf32>
    %382 = arith.addf %379, %381 : vector<8x32xf32>
    %383 = arith.addf %357, %382 : vector<8x32xf32>
    %cst_141 = arith.constant dense<0.000000e+00> : vector<8xf32>
    %384 = vector.multi_reduction <add>, %383, %cst_141 [1] : vector<8x32xf32> to vector<8xf32>
    %385 = vector.shape_cast %384 : vector<8xf32> to vector<8x1xf32>
    %cst_142 = arith.constant 3.200000e+01 : f32
    %386 = vector.broadcast %cst_142 : f32 to vector<8x1xf32>
    %387 = arith.divf %385, %386 : vector<8x1xf32>
    %388 = vector.broadcast %387 : vector<8x1xf32> to vector<8x32xf32>
    %389 = arith.subf %383, %388 : vector<8x32xf32>
    %390 = arith.mulf %389, %389 : vector<8x32xf32>
    %cst_143 = arith.constant dense<0.000000e+00> : vector<8xf32>
    %391 = vector.multi_reduction <add>, %390, %cst_143 [1] : vector<8x32xf32> to vector<8xf32>
    %392 = vector.shape_cast %391 : vector<8xf32> to vector<8x1xf32>
    %cst_144 = arith.constant 3.200000e+01 : f32
    %393 = vector.broadcast %cst_144 : f32 to vector<8x1xf32>
    %394 = arith.divf %392, %393 : vector<8x1xf32>
    %395 = vector.broadcast %387 : vector<8x1xf32> to vector<8x32xf32>
    %396 = arith.subf %383, %395 : vector<8x32xf32>
    %cst_145 = arith.constant 9.99999996E-13 : f32
    %397 = vector.broadcast %cst_145 : f32 to vector<8x1xf32>
    %398 = arith.addf %394, %397 : vector<8x1xf32>
    %399 = math.rsqrt %398 : vector<8x1xf32>
    %400 = vector.broadcast %399 : vector<8x1xf32> to vector<8x32xf32>
    %401 = arith.mulf %396, %400 : vector<8x32xf32>
    %c0_146 = arith.constant 0 : index
    %c0_147 = arith.constant 0 : index
    %402 = vector.load %arg18[%c0_146, %c0_147] : memref<1x32xf32, #tpu.memory_space<vmem>>, vector<1x32xf32>
    %403 = vector.broadcast %402 : vector<1x32xf32> to vector<8x32xf32>
    %404 = arith.mulf %401, %403 : vector<8x32xf32>
    %c0_148 = arith.constant 0 : index
    %c0_149 = arith.constant 0 : index
    %405 = vector.load %arg19[%c0_148, %c0_149] : memref<1x32xf32, #tpu.memory_space<vmem>>, vector<1x32xf32>
    %406 = vector.broadcast %405 : vector<1x32xf32> to vector<8x32xf32>
    %407 = arith.addf %404, %406 : vector<8x32xf32>
    %408 = vector.extract_strided_slice %407 {offsets = [0, 0], sizes = [1, 32], strides = [1, 1]} : vector<8x32xf32> to vector<1x32xf32>
    %409 = arith.truncf %408 : vector<1x32xf32> to vector<1x32xbf16>
    %c0_150 = arith.constant 0 : index
    %c0_151 = arith.constant 0 : index
    %410 = vector.load %arg20[%c0_150, %c0_151] : memref<32x32xbf16, #tpu.memory_space<vmem>>, vector<32x32xbf16>
    %cst_152 = arith.constant dense<0.000000e+00> : vector<1x32xf32>
    %411 = tpu.matmul %409, %410, %cst_152 {dimension_numbers = #tpu.dot_dimension_numbers<[1], [0], [0], [1], [0, 0, 1, 1], [], []>} : vector<1x32xbf16>, vector<32x32xbf16>, vector<1x32xf32> -> vector<1x32xf32>
    %c0_153 = arith.constant 0 : index
    %c0_154 = arith.constant 0 : index
    %412 = vector.load %arg21[%c0_153, %c0_154] : memref<1x32xf32, #tpu.memory_space<vmem>>, vector<1x32xf32>
    %413 = arith.addf %411, %412 : vector<1x32xf32>
    %414 = math.tanh %413 : vector<1x32xf32>
    %415 = arith.truncf %414 : vector<1x32xf32> to vector<1x32xbf16>
    %c0_155 = arith.constant 0 : index
    %c0_156 = arith.constant 0 : index
    %416 = vector.load %arg22[%c0_155, %c0_156] : memref<32x128xbf16, #tpu.memory_space<vmem>>, vector<32x128xbf16>
    %cst_157 = arith.constant dense<0.000000e+00> : vector<1x128xf32>
    %417 = tpu.matmul %415, %416, %cst_157 {dimension_numbers = #tpu.dot_dimension_numbers<[1], [0], [0], [1], [0, 0, 1, 1], [], []>} : vector<1x32xbf16>, vector<32x128xbf16>, vector<1x128xf32> -> vector<1x128xf32>
    %c0_158 = arith.constant 0 : index
    %c0_159 = arith.constant 0 : index
    %418 = vector.load %arg23[%c0_158, %c0_159] : memref<1x128xf32, #tpu.memory_space<vmem>>, vector<1x128xf32>
    %419 = arith.addf %417, %418 : vector<1x128xf32>
    %c0_160 = arith.constant 0 : index
    %c0_161 = arith.constant 0 : index
    %c0_162 = arith.constant 0 : index
    %420 = vector.load %arg26[%c0_160, %c0_161, %c0_162] : memref<1x1x128xf32, #tpu.memory_space<vmem>>, vector<1x1x128xf32>
    %421 = vector.shape_cast %420 : vector<1x1x128xf32> to vector<1x128xf32>
    %422 = vector.shape_cast %419 : vector<1x128xf32> to vector<1x1x128xf32>
    tpu.vector_store %arg26[%c0_160, %c0_161, %c0_162], %422 {strides = array<i32>} : memref<1x1x128xf32, #tpu.memory_space<vmem>>, vector<1x1x128xf32>,
    %c0_163 = arith.constant 0 : index
    %c0_164 = arith.constant 0 : index
    %c0_165 = arith.constant 0 : index
    %423 = vector.load %arg3[%c0_163, %c0_164, %c0_165] : memref<1x8x1xf32, #tpu.memory_space<vmem>>, vector<1x8x1xf32>
    %424 = vector.shape_cast %423 : vector<1x8x1xf32> to vector<8x1xf32>
    %425 = arith.truncf %407 : vector<8x32xf32> to vector<8x32xbf16>
    %c0_166 = arith.constant 0 : index
    %c0_167 = arith.constant 0 : index
    %426 = vector.load %arg24[%c0_166, %c0_167] : memref<32x128xbf16, #tpu.memory_space<vmem>>, vector<32x128xbf16>
    %cst_168 = arith.constant dense<0.000000e+00> : vector<8x128xf32>
    %427 = tpu.matmul %425, %426, %cst_168 {dimension_numbers = #tpu.dot_dimension_numbers<[1], [0], [0], [1], [0, 0, 1, 1], [], []>} : vector<8x32xbf16>, vector<32x128xbf16>, vector<8x128xf32> -> vector<8x128xf32>
    %c0_169 = arith.constant 0 : index
    %c0_170 = arith.constant 0 : index
    %428 = vector.load %arg25[%c0_169, %c0_170] : memref<1x128xf32, #tpu.memory_space<vmem>>, vector<1x128xf32>
    %429 = vector.broadcast %428 : vector<1x128xf32> to vector<8x128xf32>
    %430 = arith.addf %427, %429 : vector<8x128xf32>
    %431 = vector.broadcast %424 : vector<8x1xf32> to vector<8x128xf32>
    %432 = arith.addf %430, %431 : vector<8x128xf32>
    %c0_171 = arith.constant 0 : index
    %c0_172 = arith.constant 0 : index
    %c0_173 = arith.constant 0 : index
    %433 = vector.load %arg27[%c0_171, %c0_172, %c0_173] : memref<1x8x128xf32, #tpu.memory_space<vmem>>, vector<1x8x128xf32>
    %434 = vector.shape_cast %433 : vector<1x8x128xf32> to vector<8x128xf32>
    %435 = vector.shape_cast %432 : vector<8x128xf32> to vector<1x8x128xf32>
    tpu.vector_store %arg27[%c0_171, %c0_172, %c0_173], %435 {strides = array<i32>} : memref<1x8x128xf32, #tpu.memory_space<vmem>>, vector<1x8x128xf32>,
    return
  }
  func.func @transform_0(%arg0: i32) -> (i32, i32, i32) {
    %c0_i32 = arith.constant 0 : i32
    %c0_i32_0 = arith.constant 0 : i32
    %c0_i32_1 = arith.constant 0 : i32
    return %arg0, %c0_i32, %c0_i32_0 : i32, i32, i32
  }
  func.func @transform_1(%arg0: i32) -> (i32, i32, i32) {
    %c0_i32 = arith.constant 0 : i32
    %c0_i32_0 = arith.constant 0 : i32
    %c0_i32_1 = arith.constant 0 : i32
    return %arg0, %c0_i32, %c0_i32_0 : i32, i32, i32
  }
  func.func @transform_2(%arg0: i32) -> (i32, i32, i32) {
    %c0_i32 = arith.constant 0 : i32
    %c0_i32_0 = arith.constant 0 : i32
    %c0_i32_1 = arith.constant 0 : i32
    return %arg0, %c0_i32, %c0_i32_0 : i32, i32, i32
  }
  func.func @transform_3(%arg0: i32) -> (i32, i32) {
    %c0_i32 = arith.constant 0 : i32
    %c0_i32_0 = arith.constant 0 : i32
    %c0_i32_1 = arith.constant 0 : i32
    return %c0_i32, %c0_i32_0 : i32, i32
  }
  func.func @transform_4(%arg0: i32) -> (i32, i32) {
    %c0_i32 = arith.constant 0 : i32
    %c0_i32_0 = arith.constant 0 : i32
    %c0_i32_1 = arith.constant 0 : i32
    return %c0_i32, %c0_i32_0 : i32, i32
  }
  func.func @transform_5(%arg0: i32) -> (i32, i32) {
    %c0_i32 = arith.constant 0 : i32
    %c0_i32_0 = arith.constant 0 : i32
    %c0_i32_1 = arith.constant 0 : i32
    return %c0_i32, %c0_i32_0 : i32, i32
  }
  func.func @transform_6(%arg0: i32) -> (i32, i32) {
    %c0_i32 = arith.constant 0 : i32
    %c0_i32_0 = arith.constant 0 : i32
    %c0_i32_1 = arith.constant 0 : i32
    return %c0_i32, %c0_i32_0 : i32, i32
  }
  func.func @transform_7(%arg0: i32) -> (i32, i32) {
    %c0_i32 = arith.constant 0 : i32
    %c0_i32_0 = arith.constant 0 : i32
    %c0_i32_1 = arith.constant 0 : i32
    return %c0_i32, %c0_i32_0 : i32, i32
  }
  func.func @transform_8(%arg0: i32) -> (i32, i32) {
    %c0_i32 = arith.constant 0 : i32
    %c0_i32_0 = arith.constant 0 : i32
    %c0_i32_1 = arith.constant 0 : i32
    return %c0_i32, %c0_i32_0 : i32, i32
  }
  func.func @transform_9(%arg0: i32) -> (i32, i32) {
    %c0_i32 = arith.constant 0 : i32
    %c0_i32_0 = arith.constant 0 : i32
    %c0_i32_1 = arith.constant 0 : i32
    return %c0_i32, %c0_i32_0 : i32, i32
  }
  func.func @transform_10(%arg0: i32) -> (i32, i32) {
    %c0_i32 = arith.constant 0 : i32
    %c0_i32_0 = arith.constant 0 : i32
    %c0_i32_1 = arith.constant 0 : i32
    return %c0_i32, %c0_i32_0 : i32, i32
  }
  func.func @transform_11(%arg0: i32) -> (i32, i32) {
    %c0_i32 = arith.constant 0 : i32
    %c0_i32_0 = arith.constant 0 : i32
    %c0_i32_1 = arith.constant 0 : i32
    return %c0_i32, %c0_i32_0 : i32, i32
  }
  func.func @transform_12(%arg0: i32) -> (i32, i32) {
    %c0_i32 = arith.constant 0 : i32
    %c0_i32_0 = arith.constant 0 : i32
    %c0_i32_1 = arith.constant 0 : i32
    return %c0_i32, %c0_i32_0 : i32, i32
  }
  func.func @transform_13(%arg0: i32) -> (i32, i32) {
    %c0_i32 = arith.constant 0 : i32
    %c0_i32_0 = arith.constant 0 : i32
    %c0_i32_1 = arith.constant 0 : i32
    return %c0_i32, %c0_i32_0 : i32, i32
  }
  func.func @transform_14(%arg0: i32) -> (i32, i32) {
    %c0_i32 = arith.constant 0 : i32
    %c0_i32_0 = arith.constant 0 : i32
    %c0_i32_1 = arith.constant 0 : i32
    return %c0_i32, %c0_i32_0 : i32, i32
  }
  func.func @transform_15(%arg0: i32) -> (i32, i32) {
    %c0_i32 = arith.constant 0 : i32
    %c0_i32_0 = arith.constant 0 : i32
    %c0_i32_1 = arith.constant 0 : i32
    return %c0_i32, %c0_i32_0 : i32, i32
  }
  func.func @transform_16(%arg0: i32) -> (i32, i32) {
    %c0_i32 = arith.constant 0 : i32
    %c0_i32_0 = arith.constant 0 : i32
    %c0_i32_1 = arith.constant 0 : i32
    return %c0_i32, %c0_i32_0 : i32, i32
  }
  func.func @transform_17(%arg0: i32) -> (i32, i32) {
    %c0_i32 = arith.constant 0 : i32
    %c0_i32_0 = arith.constant 0 : i32
    %c0_i32_1 = arith.constant 0 : i32
    return %c0_i32, %c0_i32_0 : i32, i32
  }
  func.func @transform_18(%arg0: i32) -> (i32, i32) {
    %c0_i32 = arith.constant 0 : i32
    %c0_i32_0 = arith.constant 0 : i32
    %c0_i32_1 = arith.constant 0 : i32
    return %c0_i32, %c0_i32_0 : i32, i32
  }
  func.func @transform_19(%arg0: i32) -> (i32, i32) {
    %c0_i32 = arith.constant 0 : i32
    %c0_i32_0 = arith.constant 0 : i32
    %c0_i32_1 = arith.constant 0 : i32
    return %c0_i32, %c0_i32_0 : i32, i32
  }
  func.func @transform_20(%arg0: i32) -> (i32, i32) {
    %c0_i32 = arith.constant 0 : i32
    %c0_i32_0 = arith.constant 0 : i32
    %c0_i32_1 = arith.constant 0 : i32
    return %c0_i32, %c0_i32_0 : i32, i32
  }
  func.func @transform_21(%arg0: i32) -> (i32, i32) {
    %c0_i32 = arith.constant 0 : i32
    %c0_i32_0 = arith.constant 0 : i32
    %c0_i32_1 = arith.constant 0 : i32
    return %c0_i32, %c0_i32_0 : i32, i32
  }
  func.func @transform_22(%arg0: i32) -> (i32, i32) {
    %c0_i32 = arith.constant 0 : i32
    %c0_i32_0 = arith.constant 0 : i32
    %c0_i32_1 = arith.constant 0 : i32
    return %c0_i32, %c0_i32_0 : i32, i32
  }
  func.func @transform_23(%arg0: i32) -> (i32, i32) {
    %c0_i32 = arith.constant 0 : i32
    %c0_i32_0 = arith.constant 0 : i32
    %c0_i32_1 = arith.constant 0 : i32
    return %c0_i32, %c0_i32_0 : i32, i32
  }
  func.func @transform_24(%arg0: i32) -> (i32, i32) {
    %c0_i32 = arith.constant 0 : i32
    %c0_i32_0 = arith.constant 0 : i32
    %c0_i32_1 = arith.constant 0 : i32
    return %c0_i32, %c0_i32_0 : i32, i32
  }
  func.func @transform_25(%arg0: i32) -> (i32, i32, i32) {
    %c0_i32 = arith.constant 0 : i32
    %c0_i32_0 = arith.constant 0 : i32
    %c0_i32_1 = arith.constant 0 : i32
    return %arg0, %c0_i32, %c0_i32_0 : i32, i32, i32
  }
  func.func @transform_26(%arg0: i32) -> (i32, i32, i32) {
    %c0_i32 = arith.constant 0 : i32
    %c0_i32_0 = arith.constant 0 : i32
    %c0_i32_1 = arith.constant 0 : i32
    return %arg0, %c0_i32, %c0_i32_0 : i32, i32, i32
  }
}

</mosaic_0001>

<llo_original>
// kernel: tag_value_forward.1
$region0: #{tag_value_forward.1}
  #allocation0 [shape = 'u32[]', space=smem, size = 0x4, offset = 0x4, fixed_abs, tag = 'smem constant byte address 0x4 - core index']
  #allocation1 [shape = 'u32[72,128]{1,0:T(1,128)}', space=vmem, size = 0x9000, scoped, tag = 'internal scratch']
  %s0 = inlined_call_operand.vmem [shape: f32[2,8,16], index: 0, kind: input, shape index: {}]
  %s1 = inlined_call_operand.vmem [shape: f32[2,1,8], index: 1, kind: input, shape index: {}]
  %s2 = inlined_call_operand.vmem [shape: f32[2,8,1], index: 2, kind: input, shape index: {}]
  %s3 = inlined_call_operand.vmem [shape: f32[1,16], index: 3, kind: input, shape index: {}]
  %s4 = inlined_call_operand.vmem [shape: f32[1,16], index: 4, kind: input, shape index: {}]
  %s5 = inlined_call_operand.vmem [shape: bf16[16,32], index: 5, kind: input, shape index: {}]
  %s6 = inlined_call_operand.vmem [shape: f32[1,32], index: 6, kind: input, shape index: {}]
  %s7 = inlined_call_operand.vmem [shape: bf16[32,96], index: 7, kind: input, shape index: {}]
  %s8 = inlined_call_operand.vmem [shape: f32[1,96], index: 8, kind: input, shape index: {}]
  %s9 = inlined_call_operand.vmem [shape: bf16[32,32], index: 9, kind: input, shape index: {}]
  %s10 = inlined_call_operand.vmem [shape: f32[1,32], index: 10, kind: input, shape index: {}]
  %s11 = inlined_call_operand.vmem [shape: f32[1,32], index: 11, kind: input, shape index: {}]
  %s12 = inlined_call_operand.vmem [shape: f32[1,32], index: 12, kind: input, shape index: {}]
  %s13 = inlined_call_operand.vmem [shape: bf16[32,64], index: 13, kind: input, shape index: {}]
  %s14 = inlined_call_operand.vmem [shape: f32[1,64], index: 14, kind: input, shape index: {}]
  %s15 = inlined_call_operand.vmem [shape: bf16[64,32], index: 15, kind: input, shape index: {}]
  %s16 = inlined_call_operand.vmem [shape: f32[1,32], index: 16, kind: input, shape index: {}]
  %s17 = inlined_call_operand.vmem [shape: f32[1,32], index: 17, kind: input, shape index: {}]
  %s18 = inlined_call_operand.vmem [shape: f32[1,32], index: 18, kind: input, shape index: {}]
  %s19 = inlined_call_operand.vmem [shape: bf16[32,32], index: 19, kind: input, shape index: {}]
  %s20 = inlined_call_operand.vmem [shape: f32[1,32], index: 20, kind: input, shape index: {}]
  %s21 = inlined_call_operand.vmem [shape: bf16[32,128], index: 21, kind: input, shape index: {}]
  %s22 = inlined_call_operand.vmem [shape: f32[1,128], index: 22, kind: input, shape index: {}]
  %s23 = inlined_call_operand.vmem [shape: bf16[32,128], index: 23, kind: input, shape index: {}]
  %s24 = inlined_call_operand.vmem [shape: f32[1,128], index: 24, kind: input, shape index: {}]
  %s25 = inlined_call_operand.hbm [shape: f32[2,1,128], index: 25, kind: output, shape index: {0}]
  %s26 = inlined_call_operand.vmem [shape: f32[2,8,128], index: 26, kind: output, shape index: {1}]
  %27 = xla_tuple %s25, %s26
  %s28 = sld [smem:[#allocation0]]
  $region141: #{tag_value_forward.1} parent=0
    _
  %s30 = ssub.s32 1, %s28
  %s31 = scalar_select 0, %s30, %s28
  $region1: #{tag_value_forward.1} parent=0
    #allocation2 [shape = 'u8[1024]{0}', space=vmem, size = 0x400, scoped, tag = 'output window, operand 0']
    #allocation3 [shape = 's32[2]{0}', space=sflag, size = 0x8, scoped, tag = 'scoped memory for tag_value_forward.1']
    %32 = vsyncpa [#allocation3], 0
    %s33 = scalar_lea.sflag [#allocation3], 1
    %34 = vsyncpa %s33, 0
    loop: start=0, step=1, limit=4
    $region2: #{tag_value_forward.1} parent=1 // loop_pre_header
      _
    $region3: #{tag_value_forward.1} parent=1 // loop_header
      %s36 = sphi 0, %s40
      %p37 = scmp.ge.s32.totalorder %s36, 4
      %s46 = sphi 0, %s48
      %s49 = sphi 0, %s46
      %s50 = sphi 0, %s49
      %s66 = sphi 0, %s50
      %s72 = sphi 0, %s74
      %s75 = sphi 0, %s72
      %s76 = sphi 0, %s75
      %s92 = sphi 0, %s76
      %s98 = sphi 0, %s100
      %s101 = sphi 0, %s98
      %s102 = sphi 0, %s101
      %s118 = sphi 0, %s102
      %s122 = sphi 0, %s122
      %s124 = sphi 0, %s122
      %s125 = sphi 0, %s124
      %s139 = sphi 0, %s125
      %s143 = sphi 0, %s143
      %s145 = sphi 0, %s143
      %s146 = sphi 0, %s145
      %s160 = sphi 0, %s146
      %s164 = sphi 0, %s164
      %s166 = sphi 0, %s164
      %s167 = sphi 0, %s166
      %s181 = sphi 0, %s167
      %s185 = sphi 0, %s185
      %s187 = sphi 0, %s185
      %s188 = sphi 0, %s187
      %s202 = sphi 0, %s188
      %s206 = sphi 0, %s206
      %s208 = sphi 0, %s206
      %s209 = sphi 0, %s208
      %s223 = sphi 0, %s209
      %s227 = sphi 0, %s227
      %s229 = sphi 0, %s227
      %s230 = sphi 0, %s229
      %s244 = sphi 0, %s230
      %s248 = sphi 0, %s248
      %s250 = sphi 0, %s248
      %s251 = sphi 0, %s250
      %s265 = sphi 0, %s251
      %s269 = sphi 0, %s269
      %s271 = sphi 0, %s269
      %s272 = sphi 0, %s271
      %s286 = sphi 0, %s272
      %s290 = sphi 0, %s290
      %s292 = sphi 0, %s290
      %s293 = sphi 0, %s292
      %s307 = sphi 0, %s293
      %s311 = sphi 0, %s311
      %s313 = sphi 0, %s311
      %s314 = sphi 0, %s313
      %s328 = sphi 0, %s314
      %s332 = sphi 0, %s332
      %s334 = sphi 0, %s332
      %s335 = sphi 0, %s334
      %s349 = sphi 0, %s335
      %s353 = sphi 0, %s353
      %s355 = sphi 0, %s353
      %s356 = sphi 0, %s355
      %s370 = sphi 0, %s356
      %s374 = sphi 0, %s374
      %s376 = sphi 0, %s374
      %s377 = sphi 0, %s376
      %s391 = sphi 0, %s377
      %s395 = sphi 0, %s395
      %s397 = sphi 0, %s395
      %s398 = sphi 0, %s397
      %s412 = sphi 0, %s398
      %s416 = sphi 0, %s416
      %s418 = sphi 0, %s416
      %s419 = sphi 0, %s418
      %s433 = sphi 0, %s419
      %s437 = sphi 0, %s437
      %s439 = sphi 0, %s437
      %s440 = sphi 0, %s439
      %s454 = sphi 0, %s440
      %s458 = sphi 0, %s458
      %s460 = sphi 0, %s458
      %s461 = sphi 0, %s460
      %s475 = sphi 0, %s461
      %s479 = sphi 0, %s479
      %s481 = sphi 0, %s479
      %s482 = sphi 0, %s481
      %s496 = sphi 0, %s482
      %s500 = sphi 0, %s500
      %s502 = sphi 0, %s500
      %s503 = sphi 0, %s502
      %s517 = sphi 0, %s503
      %s521 = sphi 0, %s521
      %s523 = sphi 0, %s521
      %s524 = sphi 0, %s523
      %s538 = sphi 0, %s524
      %s542 = sphi 0, %s542
      %s544 = sphi 0, %s542
      %s545 = sphi 0, %s544
      %s559 = sphi 0, %s545
      %s563 = sphi 0, %s563
      %s565 = sphi 0, %s563
      %s566 = sphi 0, %s565
      %s580 = sphi 0, %s566
      %s586 = sphi 0, %s588
      %s589 = sphi 0, %s586
      %s590 = sphi 0, %s589
      %s606 = sphi 0, %s590
      %s612 = sphi 0, %s614
      %s615 = sphi 0, %s612
      %s616 = sphi 0, %s615
      %s632 = sphi 0, %s616
    $region4: #{tag_value_forward.1} parent=1 // loop_header_branch
      %39 = sbr.rel (%p37) target = $region8
    $region5: #{tag_value_forward.1} parent=1 // loop_body
      %s41 = ssub.s32 %s36, 1
      %s42 = ssub.s32 %s36, 2
      %s43 = sadd.s32 %s36, 1
      %s44 = ssub.s32 %s36, %s43
      %p45 = scmp.eq.s32.totalorder %s44, 0
      %s47 = sadd.s32 %s46, 1
      %s48 = scalar_select %p45, %s46, %s47
      %p51 = pneg %p45
      %p52 = scmp.eq.s32.totalorder %s36, 1
      %p53 = por %p51, %p52
      %p54 = scmp.ne.s32.totalorder %s46, %s49
      %p55 = scmp.eq.s32.totalorder %s36, 0
      %p56 = por %p54, %p55
      %p57 = scmp.ne.s32.totalorder %s46, %s49
      %p58 = scmp.eq.s32.totalorder %s41, 1
      %p59 = por %p57, %p58
      %p60 = scmp.ne.s32.totalorder %s49, %s50
      %p61 = scmp.eq.s32.totalorder %s41, 0
      %p62 = por %p60, %p61
      %p63 = scmp.ne.s32.totalorder %s49, %s50
      %p64 = scmp.eq.s32.totalorder %s42, 1
      %p65 = por %p63, %p64
      %p67 = scmp.ne.s32.totalorder %s50, %s66
      %p68 = scmp.eq.s32.totalorder %s42, 0
      %p69 = por %p67, %p68
      %s70 = ssub.s32 %s36, %s43
      %p71 = scmp.eq.s32.totalorder %s70, 0
      %s73 = sadd.s32 %s72, 1
      %s74 = scalar_select %p71, %s72, %s73
      %p77 = pneg %p71
      %p78 = scmp.eq.s32.totalorder %s36, 1
      %p79 = por %p77, %p78
      %p80 = scmp.ne.s32.totalorder %s72, %s75
      %p81 = scmp.eq.s32.totalorder %s36, 0
      %p82 = por %p80, %p81
      %p83 = scmp.ne.s32.totalorder %s72, %s75
      %p84 = scmp.eq.s32.totalorder %s41, 1
      %p85 = por %p83, %p84
      %p86 = scmp.ne.s32.totalorder %s75, %s76
      %p87 = scmp.eq.s32.totalorder %s41, 0
      %p88 = por %p86, %p87
      %p89 = scmp.ne.s32.totalorder %s75, %s76
      %p90 = scmp.eq.s32.totalorder %s42, 1
      %p91 = por %p89, %p90
      %p93 = scmp.ne.s32.totalorder %s76, %s92
      %p94 = scmp.eq.s32.totalorder %s42, 0
      %p95 = por %p93, %p94
      %s96 = ssub.s32 %s36, %s43
      %p97 = scmp.eq.s32.totalorder %s96, 0
      %s99 = sadd.s32 %s98, 1
      %s100 = scalar_select %p97, %s98, %s99
      %p103 = pneg %p97
      %p104 = scmp.eq.s32.totalorder %s36, 1
      %p105 = por %p103, %p104
      %p106 = scmp.ne.s32.totalorder %s98, %s101
      %p107 = scmp.eq.s32.totalorder %s36, 0
      %p108 = por %p106, %p107
      %p109 = scmp.ne.s32.totalorder %s98, %s101
      %p110 = scmp.eq.s32.totalorder %s41, 1
      %p111 = por %p109, %p110
      %p112 = scmp.ne.s32.totalorder %s101, %s102
      %p113 = scmp.eq.s32.totalorder %s41, 0
      %p114 = por %p112, %p113
      %p115 = scmp.ne.s32.totalorder %s101, %s102
      %p116 = scmp.eq.s32.totalorder %s42, 1
      %p117 = por %p115, %p116
      %p119 = scmp.ne.s32.totalorder %s102, %s118
      %p120 = scmp.eq.s32.totalorder %s42, 0
      %p121 = por %p119, %p120
      %s123 = sadd.s32 %s122, 1
      %p126 = scmp.eq.s32.totalorder %s36, 1
      %p127 = scmp.ne.s32.totalorder %s122, %s124
      %p128 = scmp.eq.s32.totalorder %s36, 0
      %p129 = por %p127, %p128
      %p130 = scmp.ne.s32.totalorder %s122, %s124
      %p131 = scmp.eq.s32.totalorder %s41, 1
      %p132 = por %p130, %p131
      %p133 = scmp.ne.s32.totalorder %s124, %s125
      %p134 = scmp.eq.s32.totalorder %s41, 0
      %p135 = por %p133, %p134
      %p136 = scmp.ne.s32.totalorder %s124, %s125
      %p137 = scmp.eq.s32.totalorder %s42, 1
      %p138 = por %p136, %p137
      %p140 = scmp.ne.s32.totalorder %s125, %s139
      %p141 = scmp.eq.s32.totalorder %s42, 0
      %p142 = por %p140, %p141
      %s144 = sadd.s32 %s143, 1
      %p147 = scmp.eq.s32.totalorder %s36, 1
      %p148 = scmp.ne.s32.totalorder %s143, %s145
      %p149 = scmp.eq.s32.totalorder %s36, 0
      %p150 = por %p148, %p149
      %p151 = scmp.ne.s32.totalorder %s143, %s145
      %p152 = scmp.eq.s32.totalorder %s41, 1
      %p153 = por %p151, %p152
      %p154 = scmp.ne.s32.totalorder %s145, %s146
      %p155 = scmp.eq.s32.totalorder %s41, 0
      %p156 = por %p154, %p155
      %p157 = scmp.ne.s32.totalorder %s145, %s146
      %p158 = scmp.eq.s32.totalorder %s42, 1
      %p159 = por %p157, %p158
      %p161 = scmp.ne.s32.totalorder %s146, %s160
      %p162 = scmp.eq.s32.totalorder %s42, 0
      %p163 = por %p161, %p162
      %s165 = sadd.s32 %s164, 1
      %p168 = scmp.eq.s32.totalorder %s36, 1
      %p169 = scmp.ne.s32.totalorder %s164, %s166
      %p170 = scmp.eq.s32.totalorder %s36, 0
      %p171 = por %p169, %p170
      %p172 = scmp.ne.s32.totalorder %s164, %s166
      %p173 = scmp.eq.s32.totalorder %s41, 1
      %p174 = por %p172, %p173
      %p175 = scmp.ne.s32.totalorder %s166, %s167
      %p176 = scmp.eq.s32.totalorder %s41, 0
      %p177 = por %p175, %p176
      %p178 = scmp.ne.s32.totalorder %s166, %s167
      %p179 = scmp.eq.s32.totalorder %s42, 1
      %p180 = por %p178, %p179
      %p182 = scmp.ne.s32.totalorder %s167, %s181
      %p183 = scmp.eq.s32.totalorder %s42, 0
      %p184 = por %p182, %p183
      %s186 = sadd.s32 %s185, 1
      %p189 = scmp.eq.s32.totalorder %s36, 1
      %p190 = scmp.ne.s32.totalorder %s185, %s187
      %p191 = scmp.eq.s32.totalorder %s36, 0
      %p192 = por %p190, %p191
      %p193 = scmp.ne.s32.totalorder %s185, %s187
      %p194 = scmp.eq.s32.totalorder %s41, 1
      %p195 = por %p193, %p194
      %p196 = scmp.ne.s32.totalorder %s187, %s188
      %p197 = scmp.eq.s32.totalorder %s41, 0
      %p198 = por %p196, %p197
      %p199 = scmp.ne.s32.totalorder %s187, %s188
      %p200 = scmp.eq.s32.totalorder %s42, 1
      %p201 = por %p199, %p200
      %p203 = scmp.ne.s32.totalorder %s188, %s202
      %p204 = scmp.eq.s32.totalorder %s42, 0
      %p205 = por %p203, %p204
      %s207 = sadd.s32 %s206, 1
      %p210 = scmp.eq.s32.totalorder %s36, 1
      %p211 = scmp.ne.s32.totalorder %s206, %s208
      %p212 = scmp.eq.s32.totalorder %s36, 0
      %p213 = por %p211, %p212
      %p214 = scmp.ne.s32.totalorder %s206, %s208
      %p215 = scmp.eq.s32.totalorder %s41, 1
      %p216 = por %p214, %p215
      %p217 = scmp.ne.s32.totalorder %s208, %s209
      %p218 = scmp.eq.s32.totalorder %s41, 0
      %p219 = por %p217, %p218
      %p220 = scmp.ne.s32.totalorder %s208, %s209
      %p221 = scmp.eq.s32.totalorder %s42, 1
      %p222 = por %p220, %p221
      %p224 = scmp.ne.s32.totalorder %s209, %s223
      %p225 = scmp.eq.s32.totalorder %s42, 0
      %p226 = por %p224, %p225
      %s228 = sadd.s32 %s227, 1
      %p231 = scmp.eq.s32.totalorder %s36, 1
      %p232 = scmp.ne.s32.totalorder %s227, %s229
      %p233 = scmp.eq.s32.totalorder %s36, 0
      %p234 = por %p232, %p233
      %p235 = scmp.ne.s32.totalorder %s227, %s229
      %p236 = scmp.eq.s32.totalorder %s41, 1
      %p237 = por %p235, %p236
      %p238 = scmp.ne.s32.totalorder %s229, %s230
      %p239 = scmp.eq.s32.totalorder %s41, 0
      %p240 = por %p238, %p239
      %p241 = scmp.ne.s32.totalorder %s229, %s230
      %p242 = scmp.eq.s32.totalorder %s42, 1
      %p243 = por %p241, %p242
      %p245 = scmp.ne.s32.totalorder %s230, %s244
      %p246 = scmp.eq.s32.totalorder %s42, 0
      %p247 = por %p245, %p246
      %s249 = sadd.s32 %s248, 1
      %p252 = scmp.eq.s32.totalorder %s36, 1
      %p253 = scmp.ne.s32.totalorder %s248, %s250
      %p254 = scmp.eq.s32.totalorder %s36, 0
      %p255 = por %p253, %p254
      %p256 = scmp.ne.s32.totalorder %s248, %s250
      %p257 = scmp.eq.s32.totalorder %s41, 1
      %p258 = por %p256, %p257
      %p259 = scmp.ne.s32.totalorder %s250, %s251
      %p260 = scmp.eq.s32.totalorder %s41, 0
      %p261 = por %p259, %p260
      %p262 = scmp.ne.s32.totalorder %s250, %s251
      %p263 = scmp.eq.s32.totalorder %s42, 1
      %p264 = por %p262, %p263
      %p266 = scmp.ne.s32.totalorder %s251, %s265
      %p267 = scmp.eq.s32.totalorder %s42, 0
      %p268 = por %p266, %p267
      %s270 = sadd.s32 %s269, 1
      %p273 = scmp.eq.s32.totalorder %s36, 1
      %p274 = scmp.ne.s32.totalorder %s269, %s271
      %p275 = scmp.eq.s32.totalorder %s36, 0
      %p276 = por %p274, %p275
      %p277 = scmp.ne.s32.totalorder %s269, %s271
      %p278 = scmp.eq.s32.totalorder %s41, 1
      %p279 = por %p277, %p278
      %p280 = scmp.ne.s32.totalorder %s271, %s272
      %p281 = scmp.eq.s32.totalorder %s41, 0
      %p282 = por %p280, %p281
      %p283 = scmp.ne.s32.totalorder %s271, %s272
      %p284 = scmp.eq.s32.totalorder %s42, 1
      %p285 = por %p283, %p284
      %p287 = scmp.ne.s32.totalorder %s272, %s286
      %p288 = scmp.eq.s32.totalorder %s42, 0
      %p289 = por %p287, %p288
      %s291 = sadd.s32 %s290, 1
      %p294 = scmp.eq.s32.totalorder %s36, 1
      %p295 = scmp.ne.s32.totalorder %s290, %s292
      %p296 = scmp.eq.s32.totalorder %s36, 0
      %p297 = por %p295, %p296
      %p298 = scmp.ne.s32.totalorder %s290, %s292
      %p299 = scmp.eq.s32.totalorder %s41, 1
      %p300 = por %p298, %p299
      %p301 = scmp.ne.s32.totalorder %s292, %s293
      %p302 = scmp.eq.s32.totalorder %s41, 0
      %p303 = por %p301, %p302
      %p304 = scmp.ne.s32.totalorder %s292, %s293
      %p305 = scmp.eq.s32.totalorder %s42, 1
      %p306 = por %p304, %p305
      %p308 = scmp.ne.s32.totalorder %s293, %s307
      %p309 = scmp.eq.s32.totalorder %s42, 0
      %p310 = por %p308, %p309
      %s312 = sadd.s32 %s311, 1
      %p315 = scmp.eq.s32.totalorder %s36, 1
      %p316 = scmp.ne.s32.totalorder %s311, %s313
      %p317 = scmp.eq.s32.totalorder %s36, 0
      %p318 = por %p316, %p317
      %p319 = scmp.ne.s32.totalorder %s311, %s313
      %p320 = scmp.eq.s32.totalorder %s41, 1
      %p321 = por %p319, %p320
      %p322 = scmp.ne.s32.totalorder %s313, %s314
      %p323 = scmp.eq.s32.totalorder %s41, 0
      %p324 = por %p322, %p323
      %p325 = scmp.ne.s32.totalorder %s313, %s314
      %p326 = scmp.eq.s32.totalorder %s42, 1
      %p327 = por %p325, %p326
      %p329 = scmp.ne.s32.totalorder %s314, %s328
      %p330 = scmp.eq.s32.totalorder %s42, 0
      %p331 = por %p329, %p330
      %s333 = sadd.s32 %s332, 1
      %p336 = scmp.eq.s32.totalorder %s36, 1
      %p337 = scmp.ne.s32.totalorder %s332, %s334
      %p338 = scmp.eq.s32.totalorder %s36, 0
      %p339 = por %p337, %p338
      %p340 = scmp.ne.s32.totalorder %s332, %s334
      %p341 = scmp.eq.s32.totalorder %s41, 1
      %p342 = por %p340, %p341
      %p343 = scmp.ne.s32.totalorder %s334, %s335
      %p344 = scmp.eq.s32.totalorder %s41, 0
      %p345 = por %p343, %p344
      %p346 = scmp.ne.s32.totalorder %s334, %s335
      %p347 = scmp.eq.s32.totalorder %s42, 1
      %p348 = por %p346, %p347
      %p350 = scmp.ne.s32.totalorder %s335, %s349
      %p351 = scmp.eq.s32.totalorder %s42, 0
      %p352 = por %p350, %p351
      %s354 = sadd.s32 %s353, 1
      %p357 = scmp.eq.s32.totalorder %s36, 1
      %p358 = scmp.ne.s32.totalorder %s353, %s355
      %p359 = scmp.eq.s32.totalorder %s36, 0
      %p360 = por %p358, %p359
      %p361 = scmp.ne.s32.totalorder %s353, %s355
      %p362 = scmp.eq.s32.totalorder %s41, 1
      %p363 = por %p361, %p362
      %p364 = scmp.ne.s32.totalorder %s355, %s356
      %p365 = scmp.eq.s32.totalorder %s41, 0
      %p366 = por %p364, %p365
      %p367 = scmp.ne.s32.totalorder %s355, %s356
      %p368 = scmp.eq.s32.totalorder %s42, 1
      %p369 = por %p367, %p368
      %p371 = scmp.ne.s32.totalorder %s356, %s370
      %p372 = scmp.eq.s32.totalorder %s42, 0
      %p373 = por %p371, %p372
      %s375 = sadd.s32 %s374, 1
      %p378 = scmp.eq.s32.totalorder %s36, 1
      %p379 = scmp.ne.s32.totalorder %s374, %s376
      %p380 = scmp.eq.s32.totalorder %s36, 0
      %p381 = por %p379, %p380
      %p382 = scmp.ne.s32.totalorder %s374, %s376
      %p383 = scmp.eq.s32.totalorder %s41, 1
      %p384 = por %p382, %p383
      %p385 = scmp.ne.s32.totalorder %s376, %s377
      %p386 = scmp.eq.s32.totalorder %s41, 0
      %p387 = por %p385, %p386
      %p388 = scmp.ne.s32.totalorder %s376, %s377
      %p389 = scmp.eq.s32.totalorder %s42, 1
      %p390 = por %p388, %p389
      %p392 = scmp.ne.s32.totalorder %s377, %s391
      %p393 = scmp.eq.s32.totalorder %s42, 0
      %p394 = por %p392, %p393
      %s396 = sadd.s32 %s395, 1
      %p399 = scmp.eq.s32.totalorder %s36, 1
      %p400 = scmp.ne.s32.totalorder %s395, %s397
      %p401 = scmp.eq.s32.totalorder %s36, 0
      %p402 = por %p400, %p401
      %p403 = scmp.ne.s32.totalorder %s395, %s397
      %p404 = scmp.eq.s32.totalorder %s41, 1
      %p405 = por %p403, %p404
      %p406 = scmp.ne.s32.totalorder %s397, %s398
      %p407 = scmp.eq.s32.totalorder %s41, 0
      %p408 = por %p406, %p407
      %p409 = scmp.ne.s32.totalorder %s397, %s398
      %p410 = scmp.eq.s32.totalorder %s42, 1
      %p411 = por %p409, %p410
      %p413 = scmp.ne.s32.totalorder %s398, %s412
      %p414 = scmp.eq.s32.totalorder %s42, 0
      %p415 = por %p413, %p414
      %s417 = sadd.s32 %s416, 1
      %p420 = scmp.eq.s32.totalorder %s36, 1
      %p421 = scmp.ne.s32.totalorder %s416, %s418
      %p422 = scmp.eq.s32.totalorder %s36, 0
      %p423 = por %p421, %p422
      %p424 = scmp.ne.s32.totalorder %s416, %s418
      %p425 = scmp.eq.s32.totalorder %s41, 1
      %p426 = por %p424, %p425
      %p427 = scmp.ne.s32.totalorder %s418, %s419
      %p428 = scmp.eq.s32.totalorder %s41, 0
      %p429 = por %p427, %p428
      %p430 = scmp.ne.s32.totalorder %s418, %s419
      %p431 = scmp.eq.s32.totalorder %s42, 1
      %p432 = por %p430, %p431
      %p434 = scmp.ne.s32.totalorder %s419, %s433
      %p435 = scmp.eq.s32.totalorder %s42, 0
      %p436 = por %p434, %p435
      %s438 = sadd.s32 %s437, 1
      %p441 = scmp.eq.s32.totalorder %s36, 1
      %p442 = scmp.ne.s32.totalorder %s437, %s439
      %p443 = scmp.eq.s32.totalorder %s36, 0
      %p444 = por %p442, %p443
      %p445 = scmp.ne.s32.totalorder %s437, %s439
      %p446 = scmp.eq.s32.totalorder %s41, 1
      %p447 = por %p445, %p446
      %p448 = scmp.ne.s32.totalorder %s439, %s440
      %p449 = scmp.eq.s32.totalorder %s41, 0
      %p450 = por %p448, %p449
      %p451 = scmp.ne.s32.totalorder %s439, %s440
      %p452 = scmp.eq.s32.totalorder %s42, 1
      %p453 = por %p451, %p452
      %p455 = scmp.ne.s32.totalorder %s440, %s454
      %p456 = scmp.eq.s32.totalorder %s42, 0
      %p457 = por %p455, %p456
      %s459 = sadd.s32 %s458, 1
      %p462 = scmp.eq.s32.totalorder %s36, 1
      %p463 = scmp.ne.s32.totalorder %s458, %s460
      %p464 = scmp.eq.s32.totalorder %s36, 0
      %p465 = por %p463, %p464
      %p466 = scmp.ne.s32.totalorder %s458, %s460
      %p467 = scmp.eq.s32.totalorder %s41, 1
      %p468 = por %p466, %p467
      %p469 = scmp.ne.s32.totalorder %s460, %s461
      %p470 = scmp.eq.s32.totalorder %s41, 0
      %p471 = por %p469, %p470
      %p472 = scmp.ne.s32.totalorder %s460, %s461
      %p473 = scmp.eq.s32.totalorder %s42, 1
      %p474 = por %p472, %p473
      %p476 = scmp.ne.s32.totalorder %s461, %s475
      %p477 = scmp.eq.s32.totalorder %s42, 0
      %p478 = por %p476, %p477
      %s480 = sadd.s32 %s479, 1
      %p483 = scmp.eq.s32.totalorder %s36, 1
      %p484 = scmp.ne.s32.totalorder %s479, %s481
      %p485 = scmp.eq.s32.totalorder %s36, 0
      %p486 = por %p484, %p485
      %p487 = scmp.ne.s32.totalorder %s479, %s481
      %p488 = scmp.eq.s32.totalorder %s41, 1
      %p489 = por %p487, %p488
      %p490 = scmp.ne.s32.totalorder %s481, %s482
      %p491 = scmp.eq.s32.totalorder %s41, 0
      %p492 = por %p490, %p491
      %p493 = scmp.ne.s32.totalorder %s481, %s482
      %p494 = scmp.eq.s32.totalorder %s42, 1
      %p495 = por %p493, %p494
      %p497 = scmp.ne.s32.totalorder %s482, %s496
      %p498 = scmp.eq.s32.totalorder %s42, 0
      %p499 = por %p497, %p498
      %s501 = sadd.s32 %s500, 1
      %p504 = scmp.eq.s32.totalorder %s36, 1
      %p505 = scmp.ne.s32.totalorder %s500, %s502
      %p506 = scmp.eq.s32.totalorder %s36, 0
      %p507 = por %p505, %p506
      %p508 = scmp.ne.s32.totalorder %s500, %s502
      %p509 = scmp.eq.s32.totalorder %s41, 1
      %p510 = por %p508, %p509
      %p511 = scmp.ne.s32.totalorder %s502, %s503
      %p512 = scmp.eq.s32.totalorder %s41, 0
      %p513 = por %p511, %p512
      %p514 = scmp.ne.s32.totalorder %s502, %s503
      %p515 = scmp.eq.s32.totalorder %s42, 1
      %p516 = por %p514, %p515
      %p518 = scmp.ne.s32.totalorder %s503, %s517
      %p519 = scmp.eq.s32.totalorder %s42, 0
      %p520 = por %p518, %p519
      %s522 = sadd.s32 %s521, 1
      %p525 = scmp.eq.s32.totalorder %s36, 1
      %p526 = scmp.ne.s32.totalorder %s521, %s523
      %p527 = scmp.eq.s32.totalorder %s36, 0
      %p528 = por %p526, %p527
      %p529 = scmp.ne.s32.totalorder %s521, %s523
      %p530 = scmp.eq.s32.totalorder %s41, 1
      %p531 = por %p529, %p530
      %p532 = scmp.ne.s32.totalorder %s523, %s524
      %p533 = scmp.eq.s32.totalorder %s41, 0
      %p534 = por %p532, %p533
      %p535 = scmp.ne.s32.totalorder %s523, %s524
      %p536 = scmp.eq.s32.totalorder %s42, 1
      %p537 = por %p535, %p536
      %p539 = scmp.ne.s32.totalorder %s524, %s538
      %p540 = scmp.eq.s32.totalorder %s42, 0
      %p541 = por %p539, %p540
      %s543 = sadd.s32 %s542, 1
      %p546 = scmp.eq.s32.totalorder %s36, 1
      %p547 = scmp.ne.s32.totalorder %s542, %s544
      %p548 = scmp.eq.s32.totalorder %s36, 0
      %p549 = por %p547, %p548
      %p550 = scmp.ne.s32.totalorder %s542, %s544
      %p551 = scmp.eq.s32.totalorder %s41, 1
      %p552 = por %p550, %p551
      %p553 = scmp.ne.s32.totalorder %s544, %s545
      %p554 = scmp.eq.s32.totalorder %s41, 0
      %p555 = por %p553, %p554
      %p556 = scmp.ne.s32.totalorder %s544, %s545
      %p557 = scmp.eq.s32.totalorder %s42, 1
      %p558 = por %p556, %p557
      %p560 = scmp.ne.s32.totalorder %s545, %s559
      %p561 = scmp.eq.s32.totalorder %s42, 0
      %p562 = por %p560, %p561
      %s564 = sadd.s32 %s563, 1
      %p567 = scmp.eq.s32.totalorder %s36, 1
      %p568 = scmp.ne.s32.totalorder %s563, %s565
      %p569 = scmp.eq.s32.totalorder %s36, 0
      %p570 = por %p568, %p569
      %p571 = scmp.ne.s32.totalorder %s563, %s565
      %p572 = scmp.eq.s32.totalorder %s41, 1
      %p573 = por %p571, %p572
      %p574 = scmp.ne.s32.totalorder %s565, %s566
      %p575 = scmp.eq.s32.totalorder %s41, 0
      %p576 = por %p574, %p575
      %p577 = scmp.ne.s32.totalorder %s565, %s566
      %p578 = scmp.eq.s32.totalorder %s42, 1
      %p579 = por %p577, %p578
      %p581 = scmp.ne.s32.totalorder %s566, %s580
      %p582 = scmp.eq.s32.totalorder %s42, 0
      %p583 = por %p581, %p582
      %s584 = ssub.s32 %s36, %s43
      %p585 = scmp.eq.s32.totalorder %s584, 0
      %s587 = sadd.s32 %s586, 1
      %s588 = scalar_select %p585, %s586, %s587
      %p591 = pneg %p585
      %p592 = scmp.eq.s32.totalorder %s36, 1
      %p593 = por %p591, %p592
      %p594 = scmp.ne.s32.totalorder %s586, %s589
      %p595 = scmp.eq.s32.totalorder %s36, 0
      %p596 = por %p594, %p595
      %p597 = scmp.ne.s32.totalorder %s586, %s589
      %p598 = scmp.eq.s32.totalorder %s41, 1
      %p599 = por %p597, %p598
      %p600 = scmp.ne.s32.totalorder %s589, %s590
      %p601 = scmp.eq.s32.totalorder %s41, 0
      %p602 = por %p600, %p601
      %p603 = scmp.ne.s32.totalorder %s589, %s590
      %p604 = scmp.eq.s32.totalorder %s42, 1
      %p605 = por %p603, %p604
      %p607 = scmp.ne.s32.totalorder %s590, %s606
      %p608 = scmp.eq.s32.totalorder %s42, 0
      %p609 = por %p607, %p608
      %s610 = ssub.s32 %s36, %s43
      %p611 = scmp.eq.s32.totalorder %s610, 0
      %s613 = sadd.s32 %s612, 1
      %s614 = scalar_select %p611, %s612, %s613
      %p617 = pneg %p611
      %p618 = scmp.eq.s32.totalorder %s36, 1
      %p619 = por %p617, %p618
      %p620 = scmp.ne.s32.totalorder %s612, %s615
      %p621 = scmp.eq.s32.totalorder %s36, 0
      %p622 = por %p620, %p621
      %p623 = scmp.ne.s32.totalorder %s612, %s615
      %p624 = scmp.eq.s32.totalorder %s41, 1
      %p625 = por %p623, %p624
      %p626 = scmp.ne.s32.totalorder %s615, %s616
      %p627 = scmp.eq.s32.totalorder %s41, 0
      %p628 = por %p626, %p627
      %p629 = scmp.ne.s32.totalorder %s615, %s616
      %p630 = scmp.eq.s32.totalorder %s42, 1
      %p631 = por %p629, %p630
      %p633 = scmp.ne.s32.totalorder %s616, %s632
      %p634 = scmp.eq.s32.totalorder %s42, 0
      %p635 = por %p633, %p634
      %p636 = scmp.le.s32.totalorder 1, %s36
      %p637 = scmp.lt.s32.totalorder %s36, 3
      %p638 = pnand %p636, %p637
      %p639 = pneg %p638
      // Predicated region
      $region9: #{tag_value_forward.1} parent=5 // pred_check
        _
      $region10: #{tag_value_forward.1} parent=5 // pred_check_branch
        %641 = sbr.rel (%p638) target = $region12
      $region11: #{tag_value_forward.1} parent=5 // pred_region
        %s642 = ssub.s32 %s36, 1
        // Predicated region
        $region13: #{tag_value_forward.1} parent=11 // pred_check
          %p643 = pneg %p135
        $region14: #{tag_value_forward.1} parent=11 // pred_check_branch
          %645 = sbr.rel (%p643) target = $region16
        $region15: #{tag_value_forward.1} parent=11 // pred_region
          _
        $region16: #{tag_value_forward.1} parent=11 // pred_fallthru
          _
        // Predicated region
        $region17: #{tag_value_forward.1} parent=11 // pred_check
          %p646 = pneg %p156
        $region18: #{tag_value_forward.1} parent=11 // pred_check_branch
          %648 = sbr.rel (%p646) target = $region20
        $region19: #{tag_value_forward.1} parent=11 // pred_region
          _
        $region20: #{tag_value_forward.1} parent=11 // pred_fallthru
          _
        // Predicated region
        $region21: #{tag_value_forward.1} parent=11 // pred_check
          %p649 = pneg %p177
        $region22: #{tag_value_forward.1} parent=11 // pred_check_branch
          %651 = sbr.rel (%p649) target = $region24
        $region23: #{tag_value_forward.1} parent=11 // pred_region
          _
        $region24: #{tag_value_forward.1} parent=11 // pred_fallthru
          _
        // Predicated region
        $region25: #{tag_value_forward.1} parent=11 // pred_check
          %p652 = pneg %p198
        $region26: #{tag_value_forward.1} parent=11 // pred_check_branch
          %654 = sbr.rel (%p652) target = $region28
        $region27: #{tag_value_forward.1} parent=11 // pred_region
          _
        $region28: #{tag_value_forward.1} parent=11 // pred_fallthru
          _
        // Predicated region
        $region29: #{tag_value_forward.1} parent=11 // pred_check
          %p655 = pneg %p219
        $region30: #{tag_value_forward.1} parent=11 // pred_check_branch
          %657 = sbr.rel (%p655) target = $region32
        $region31: #{tag_value_forward.1} parent=11 // pred_region
          _
        $region32: #{tag_value_forward.1} parent=11 // pred_fallthru
          _
        // Predicated region
        $region33: #{tag_value_forward.1} parent=11 // pred_check
          %p658 = pneg %p240
        $region34: #{tag_value_forward.1} parent=11 // pred_check_branch
          %660 = sbr.rel (%p658) target = $region36
        $region35: #{tag_value_forward.1} parent=11 // pred_region
          _
        $region36: #{tag_value_forward.1} parent=11 // pred_fallthru
          _
        // Predicated region
        $region37: #{tag_value_forward.1} parent=11 // pred_check
          %p661 = pneg %p261
        $region38: #{tag_value_forward.1} parent=11 // pred_check_branch
          %663 = sbr.rel (%p661) target = $region40
        $region39: #{tag_value_forward.1} parent=11 // pred_region
          _
        $region40: #{tag_value_forward.1} parent=11 // pred_fallthru
          _
        // Predicated region
        $region41: #{tag_value_forward.1} parent=11 // pred_check
          %p664 = pneg %p282
        $region42: #{tag_value_forward.1} parent=11 // pred_check_branch
          %666 = sbr.rel (%p664) target = $region44
        $region43: #{tag_value_forward.1} parent=11 // pred_region
          _
        $region44: #{tag_value_forward.1} parent=11 // pred_fallthru
          _
        // Predicated region
        $region45: #{tag_value_forward.1} parent=11 // pred_check
          %p667 = pneg %p303
        $region46: #{tag_value_forward.1} parent=11 // pred_check_branch
          %669 = sbr.rel (%p667) target = $region48
        $region47: #{tag_value_forward.1} parent=11 // pred_region
          _
        $region48: #{tag_value_forward.1} parent=11 // pred_fallthru
          _
        // Predicated region
        $region49: #{tag_value_forward.1} parent=11 // pred_check
          %p670 = pneg %p324
        $region50: #{tag_value_forward.1} parent=11 // pred_check_branch
          %672 = sbr.rel (%p670) target = $region52
        $region51: #{tag_value_forward.1} parent=11 // pred_region
          _
        $region52: #{tag_value_forward.1} parent=11 // pred_fallthru
          _
        // Predicated region
        $region53: #{tag_value_forward.1} parent=11 // pred_check
          %p673 = pneg %p345
        $region54: #{tag_value_forward.1} parent=11 // pred_check_branch
          %675 = sbr.rel (%p673) target = $region56
        $region55: #{tag_value_forward.1} parent=11 // pred_region
          _
        $region56: #{tag_value_forward.1} parent=11 // pred_fallthru
          _
        // Predicated region
        $region57: #{tag_value_forward.1} parent=11 // pred_check
          %p676 = pneg %p366
        $region58: #{tag_value_forward.1} parent=11 // pred_check_branch
          %678 = sbr.rel (%p676) target = $region60
        $region59: #{tag_value_forward.1} parent=11 // pred_region
          _
        $region60: #{tag_value_forward.1} parent=11 // pred_fallthru
          _
        // Predicated region
        $region61: #{tag_value_forward.1} parent=11 // pred_check
          %p679 = pneg %p387
        $region62: #{tag_value_forward.1} parent=11 // pred_check_branch
          %681 = sbr.rel (%p679) target = $region64
        $region63: #{tag_value_forward.1} parent=11 // pred_region
          _
        $region64: #{tag_value_forward.1} parent=11 // pred_fallthru
          _
        // Predicated region
        $region65: #{tag_value_forward.1} parent=11 // pred_check
          %p682 = pneg %p408
        $region66: #{tag_value_forward.1} parent=11 // pred_check_branch
          %684 = sbr.rel (%p682) target = $region68
        $region67: #{tag_value_forward.1} parent=11 // pred_region
          _
        $region68: #{tag_value_forward.1} parent=11 // pred_fallthru
          _
        // Predicated region
        $region69: #{tag_value_forward.1} parent=11 // pred_check
          %p685 = pneg %p429
        $region70: #{tag_value_forward.1} parent=11 // pred_check_branch
          %687 = sbr.rel (%p685) target = $region72
        $region71: #{tag_value_forward.1} parent=11 // pred_region
          _
        $region72: #{tag_value_forward.1} parent=11 // pred_fallthru
          _
        // Predicated region
        $region73: #{tag_value_forward.1} parent=11 // pred_check
          %p688 = pneg %p450
        $region74: #{tag_value_forward.1} parent=11 // pred_check_branch
          %690 = sbr.rel (%p688) target = $region76
        $region75: #{tag_value_forward.1} parent=11 // pred_region
          _
        $region76: #{tag_value_forward.1} parent=11 // pred_fallthru
          _
        // Predicated region
        $region77: #{tag_value_forward.1} parent=11 // pred_check
          %p691 = pneg %p471
        $region78: #{tag_value_forward.1} parent=11 // pred_check_branch
          %693 = sbr.rel (%p691) target = $region80
        $region79: #{tag_value_forward.1} parent=11 // pred_region
          _
        $region80: #{tag_value_forward.1} parent=11 // pred_fallthru
          _
        // Predicated region
        $region81: #{tag_value_forward.1} parent=11 // pred_check
          %p694 = pneg %p492
        $region82: #{tag_value_forward.1} parent=11 // pred_check_branch
          %696 = sbr.rel (%p694) target = $region84
        $region83: #{tag_value_forward.1} parent=11 // pred_region
          _
        $region84: #{tag_value_forward.1} parent=11 // pred_fallthru
          _
        // Predicated region
        $region85: #{tag_value_forward.1} parent=11 // pred_check
          %p697 = pneg %p513
        $region86: #{tag_value_forward.1} parent=11 // pred_check_branch
          %699 = sbr.rel (%p697) target = $region88
        $region87: #{tag_value_forward.1} parent=11 // pred_region
          _
        $region88: #{tag_value_forward.1} parent=11 // pred_fallthru
          _
        // Predicated region
        $region89: #{tag_value_forward.1} parent=11 // pred_check
          %p700 = pneg %p534
        $region90: #{tag_value_forward.1} parent=11 // pred_check_branch
          %702 = sbr.rel (%p700) target = $region92
        $region91: #{tag_value_forward.1} parent=11 // pred_region
          _
        $region92: #{tag_value_forward.1} parent=11 // pred_fallthru
          _
        // Predicated region
        $region93: #{tag_value_forward.1} parent=11 // pred_check
          %p703 = pneg %p555
        $region94: #{tag_value_forward.1} parent=11 // pred_check_branch
          %705 = sbr.rel (%p703) target = $region96
        $region95: #{tag_value_forward.1} parent=11 // pred_region
          _
        $region96: #{tag_value_forward.1} parent=11 // pred_fallthru
          _
        // Predicated region
        $region97: #{tag_value_forward.1} parent=11 // pred_check
          %p706 = pneg %p576
        $region98: #{tag_value_forward.1} parent=11 // pred_check_branch
          %708 = sbr.rel (%p706) target = $region100
        $region99: #{tag_value_forward.1} parent=11 // pred_region
          _
        $region100: #{tag_value_forward.1} parent=11 // pred_fallthru
          _
      $region12: #{tag_value_forward.1} parent=5 // pred_fallthru
        _
      %p709 = scmp.lt.s32.totalorder %s36, 2
      // Predicated region
      $region101: #{tag_value_forward.1} parent=5 // pred_check
        %p710 = pneg %p709
      $region102: #{tag_value_forward.1} parent=5 // pred_check_branch
        %712 = sbr.rel (%p710) target = $region104
      $region103: #{tag_value_forward.1} parent=5 // pred_region
        // Predicated region
        $region105: #{tag_value_forward.1} parent=103 // pred_check
          %p713 = pneg %p56
        $region106: #{tag_value_forward.1} parent=103 // pred_check_branch
          %715 = sbr.rel (%p713) target = $region108
        $region107: #{tag_value_forward.1} parent=103 // pred_region
          %p716 = scmp.lt.s32.totalorder %s36, 1
          %s717 = scalar_select %p716, %s36, 1
          %s718 = smul.addr %s717, 8
          %s719 = scalar_lea.vmem %s0, %s718
        $region108: #{tag_value_forward.1} parent=103 // pred_fallthru
          _
        // Predicated region
        $region109: #{tag_value_forward.1} parent=103 // pred_check
          %p720 = pneg %p82
        $region110: #{tag_value_forward.1} parent=103 // pred_check_branch
          %722 = sbr.rel (%p720) target = $region112
        $region111: #{tag_value_forward.1} parent=103 // pred_region
          %p723 = scmp.lt.s32.totalorder %s36, 1
          %s724 = scalar_select %p723, %s36, 1
          %s725 = scalar_lea.vmem %s1, %s724
        $region112: #{tag_value_forward.1} parent=103 // pred_fallthru
          _
        // Predicated region
        $region113: #{tag_value_forward.1} parent=103 // pred_check
          %p726 = pneg %p108
        $region114: #{tag_value_forward.1} parent=103 // pred_check_branch
          %728 = sbr.rel (%p726) target = $region116
        $region115: #{tag_value_forward.1} parent=103 // pred_region
          %p729 = scmp.lt.s32.totalorder %s36, 1
          %s730 = scalar_select %p729, %s36, 1
          %s731 = smul.addr %s730, 8
          %s732 = scalar_lea.vmem %s2, %s731
        $region116: #{tag_value_forward.1} parent=103 // pred_fallthru
          _
      $region104: #{tag_value_forward.1} parent=5 // pred_fallthru
        _
      %p733 = scmp.le.s32.totalorder 1, %s36
      %p734 = scmp.lt.s32.totalorder %s36, 3
      %p735 = pnand %p733, %p734
      %p736 = pneg %p735
      // Predicated region
      $region117: #{tag_value_forward.1} parent=5 // pred_check
        _
      $region118: #{tag_value_forward.1} parent=5 // pred_check_branch
        %738 = sbr.rel (%p735) target = $region120
      $region119: #{tag_value_forward.1} parent=5 // pred_region
        %s739 = ssub.s32 %s36, 1
        %p740 = scmp.lt.s32.totalorder %s41, 1
        %s741 = scalar_select %p740, %s41, 1
        %s742 = smul.addr %s741, 8
        %s743 = scalar_lea.vmem %s0, %s742
        %p744 = pneg %p62
        %p745 = pneg %p59
        %p746 = scmp.lt.s32.totalorder %s41, 1
        %s747 = scalar_select %p746, %s41, 1
        %s748 = scalar_lea.vmem %s1, %s747
        %p749 = pneg %p88
        %p750 = pneg %p85
        %p751 = scmp.lt.s32.totalorder %s41, 1
        %s752 = scalar_select %p751, %s41, 1
        %s753 = smul.addr %s752, 8
        %s754 = scalar_lea.vmem %s2, %s753
        %p755 = pneg %p114
        %p756 = pneg %p111
        %p757 = pneg %p135
        %p758 = pneg %p132
        %p759 = pneg %p156
        %p760 = pneg %p153
        %p761 = pneg %p177
        %p762 = pneg %p174
        %p763 = pneg %p198
        %p764 = pneg %p195
        %p765 = pneg %p219
        %p766 = pneg %p216
        %p767 = pneg %p240
        %p768 = pneg %p237
        %p769 = pneg %p261
        %p770 = pneg %p258
        %p771 = pneg %p282
        %p772 = pneg %p279
        %p773 = pneg %p303
        %p774 = pneg %p300
        %p775 = pneg %p324
        %p776 = pneg %p321
        %p777 = pneg %p345
        %p778 = pneg %p342
        %p779 = pneg %p366
        %p780 = pneg %p363
        %p781 = pneg %p387
        %p782 = pneg %p384
        %p783 = pneg %p408
        %p784 = pneg %p405
        %p785 = pneg %p429
        %p786 = pneg %p426
        %p787 = pneg %p450
        %p788 = pneg %p447
        %p789 = pneg %p471
        %p790 = pneg %p468
        %p791 = pneg %p492
        %p792 = pneg %p489
        %p793 = pneg %p513
        %p794 = pneg %p510
        %p795 = pneg %p534
        %p796 = pneg %p531
        %p797 = pneg %p555
        %p798 = pneg %p552
        %p799 = pneg %p576
        %p800 = pneg %p573
        %p801 = pneg %p602
        %p802 = pneg %p599
        %s803 = sand.u32 %s589, 1
        %s804 = scalar_lea.sflag [#allocation3], %s803
        %s805 = sand.u32 %s589, 1
        %s806 = scalar_lea.vmem [#allocation2], %s805
        %p807 = pneg %p628
        %p808 = pneg %p625
        %p809 = scmp.lt.s32.totalorder %s41, 1
        %s810 = scalar_select %p809, %s41, 1
        %s811 = smul.addr %s810, 8
        %s812 = scalar_lea.vmem %s26, %s811
        %p813 = scmp.lt.s32.totalorder %s41, 1
        %s814 = scalar_select %p813, %s41, 1
        %s815 = smul.addr %s814, 8
        %s816 = scalar_lea.vmem %s0, %s815
        %p817 = scmp.lt.s32.totalorder %s41, 1
        %s818 = scalar_select %p817, %s41, 1
        %s819 = scalar_lea.vmem %s1, %s818
        %p820 = scmp.lt.s32.totalorder %s41, 1
        %s821 = scalar_select %p820, %s41, 1
        %s822 = smul.addr %s821, 8
        %s823 = scalar_lea.vmem %s2, %s822
        %p824 = scmp.lt.s32.totalorder %s41, 1
        %s825 = scalar_select %p824, %s41, 1
        %s826 = smul.addr %s825, 8
        %s827 = scalar_lea.vmem %s26, %s826
        %v829 = vld [vmem:[%s816] sm:$0xff]
        %vm830 = vcmask 130048
        %v831 = vsel %vm830, %v829, 0.0
        %832 = vadd.xlane.f32.xlu0 %v831
        %v833 = vpop.xlane.xlu0 %832
        %v834 = vrcp.pop 16.0
        %v835 = vmul.f32 16.0, %v834
        %v836 = vsub.f32 1.0, %v835
        %v837 = vmul.f32 %v834, %v836
        %v838 = vadd.f32 %v834, %v837
        %vm839 = vweird.f32 %v834
        %v840 = vsel %vm839, %v834, %v838
        %v841 = vmul.f32 %v833, %v840
        %v842 = vsub.f32 %v829, %v841
        %v843 = vmul.f32 %v842, %v842
        %v844 = vsel %vm830, %v843, 0.0
        %845 = vadd.xlane.f32.xlu0 %v844
        %v846 = vpop.xlane.xlu0 %845
        %v847 = vmul.f32 %v846, %v840
        %v848 = vadd.f32 %v847, 1e-12
        %v849 = vrsqrt.pop %v848
        %v850 = vmul.f32 %v849, %v848
        %v851 = vmul.f32 %v850, %v849
        %v852 = vmul.f32 0.5, %v851
        %v853 = vsub.f32 1.5, %v852
        %v854 = vmul.f32 %v849, %v853
        %vm855 = vweird.f32 %v848
        %vm856 = vweird.f32 %v849
        %vm857 = vmor %vm855, %vm856
        %v858 = vsel %vm857, %v849, %v854
        %v859 = vmul.f32 %v842, %v858
        %v860 = vld [vmem:[%s3] sm:$0x1]
        %v862 = vperm.slane %v860, 0
        %v864 = vmul.f32 %v859, %v862
        %v865 = vld [vmem:[%s4] sm:$0x1]
        %v867 = vperm.slane %v865, 0
        %v869 = vadd.f32 %v864, %v867
        %v870 = vpack.c.bf16 %v869, %v869
        %v871 = vld [vmem:[%s5] sm:$0xf]
        %v872 = vld [vmem:[%s5 + $0x4] sm:$0xf]
        %v873 = vld [vmem:[%s6] sm:$0x1]
        %v875 = vperm.slane %v873, 0
        %v879 = vunpack.c.l.b16 %v871
        %v880 = vunpack.c.l.b16 %v872
        %v881 = vpack.c.b16 %v880, %v879
        %v884 = vsel %vm830, %v870, 0
        %886 = vmatpush.bf16.msra.mxu0 0
        %887 = vmatpush.bf16.msra.mxu0 0
        %888 = vmatpush.bf16.msra.mxu0 0
        %889 = vmatpush.bf16.msra.mxu0 0
        %890 = vmatpush.bf16.msra.mxu0 0
        %891 = vmatpush.bf16.msra.mxu0 0
        %892 = vmatpush.bf16.msra.mxu0 0
        %893 = vmatpush.bf16.msra.mxu0 %v881
        %894 = vmatmul.bf16.gmra.mxu0 %v884
        %v895 = vpop.f32.mrf.mxu0
        %v896 = vadd.f32 %v875, %v895
        %v897 = vpop.f32.mrf.mxu0
        %898 = vdwg.mxu0
        %v899 = vld [vmem:[%s819] sm:$0x1]
        %v900 = vpack.c.bf16 %v896, %v896
        %v901 = vld [vmem:[%s7] sm:$0xf]
        %v902 = vld [vmem:[%s7 + $0x4] sm:$0xf]
        %v903 = vld [vmem:[%s7 + $0x8] sm:$0xf]
        %v904 = vld [vmem:[%s7 + $0xc] sm:$0xf]
        %v905 = vld [vmem:[%s8] sm:$0x1]
        %v907 = vperm.slane %v905, 0
        %v913 = vunpack.c.l.b16 %v901
        %v914 = vunpack.c.l.b16 %v902
        %v915 = vunpack.c.l.b16 %v903
        %v916 = vunpack.c.l.b16 %v904
        %v917 = vpack.c.b16 %v914, %v913
        %v918 = vpack.c.b16 %v916, %v915
        %vm921 = vcmask 261120
        %v923 = vsel %vm921, %v900, 0
        %925 = vmatpush.bf16.msra.mxu0 0
        %926 = vmatpush.bf16.msra.mxu0 0
        %927 = vmatpush.bf16.msra.mxu0 0
        %928 = vmatpush.bf16.msra.mxu0 0
        %929 = vmatpush.bf16.msra.mxu0 0
        %930 = vmatpush.bf16.msra.mxu0 0
        %931 = vmatpush.bf16.msra.mxu0 %v918
        %932 = vmatpush.bf16.msra.mxu0 %v917
        %933 = vmatmul.bf16.gmra.mxu0 %v923
        %v934 = vpop.f32.mrf.mxu0
        %v935 = vadd.f32 %v907, %v934
        %v936 = vpop.f32.mrf.mxu0
        %937 = vdwg.mxu0
        %v938 = vpack.c.bf16 %v935, %v935
        %940 = vrot.lane.b32.xlu0 %v938, 96
        %v941 = vpop.permute.xlu0 %940
        %vm942 = vcmask 64512
        %v944 = vsel %vm942, %v938, 0
        %v947 = vsel %vm942, %v941, 0
        %949 = vmatpush.bf16.xpose.msra.mxu0 0
        %950 = vmatpush.bf16.xpose.msra.mxu0 0
        %951 = vmatpush.bf16.xpose.msra.mxu0 0
        %952 = vmatpush.bf16.xpose.msra.mxu0 0
        %953 = vmatpush.bf16.xpose.msra.mxu0 0
        %954 = vmatpush.bf16.xpose.msra.mxu0 0
        %955 = vmatpush.bf16.xpose.msra.mxu0 0
        %956 = vmatpush.bf16.xpose.msra.mxu0 %v947
        %957 = vmatmul.bf16.gmra.mxu0 %v944
        %v958 = vpop.f32.mrf.mxu0
        %v959 = vadd.f32 0.0, %v958
        %v960 = vpop.f32.mrf.mxu0
        %961 = vdwg.mxu0
        %v962 = vmul.f32 %v959, 0.35355338
        %v964 = vperm.slane %v899, 0
        %v966 = vadd.f32 %v962, %v964
        %v967 = vsel %vm942, %v966, -inf
        %968 = vmax.xlane.f32.xlu0 %v967
        %v969 = vpop.xlane.xlu0 %968
        %v970 = vsub.f32 %v966, %v969
        %v971 = vmul.f32 %v970, 1.442695
        %v972 = vpow.pop %v971
        %v973 = vsel %vm942, %v972, 0.0
        %974 = vadd.xlane.f32.xlu0 %v973
        %v975 = vpop.xlane.xlu0 %974
        %v976 = vrcp.pop %v975
        %v977 = vmul.f32 %v975, %v976
        %v978 = vsub.f32 1.0, %v977
        %v979 = vmul.f32 %v976, %v978
        %v980 = vadd.f32 %v976, %v979
        %vm981 = vweird.f32 %v975
        %vm982 = vweird.f32 %v976
        %vm983 = vmor %vm981, %vm982
        %v984 = vsel %vm983, %v976, %v980
        %v985 = vand.u32 2147483647, %v975
        %vm986 = vcmp.eq.f32.partialorder %v985, 8.507059e+37
        %v987 = vand.u32 %v975, 2147483648
        %v988 = vor.u32 1.1754944e-38, %v987
        %v989 = vsel %vm986, %v988, %v984
        %v990 = vmul.f32 %v972, %v989
        %v991 = vpack.c.bf16 %v990, %v990
        %992 = vrot.lane.b32.xlu0 %v938, 64
        %v993 = vpop.permute.xlu0 %992
        %v995 = vsel %vm942, %v991, 0
        %vm997 = vcmask 1043456
        %v999 = vsel %vm997, %v993, 0
        %1001 = vmatpush.bf16.msra.mxu0 0
        %1002 = vmatpush.bf16.msra.mxu0 0
        %1003 = vmatpush.bf16.msra.mxu0 0
        %1004 = vmatpush.bf16.msra.mxu0 0
        %1005 = vmatpush.bf16.msra.mxu0 0
        %1006 = vmatpush.bf16.msra.mxu0 0
        %1007 = vmatpush.bf16.msra.mxu0 0
        %1008 = vmatpush.bf16.msra.mxu0 %v999
        %1009 = vmatmul.bf16.gmra.mxu0 %v995
        %v1010 = vpop.f32.mrf.mxu0
        %v1011 = vadd.f32 0.0, %v1010
        %v1012 = vpop.f32.mrf.mxu0
        %1013 = vdwg.mxu0
        %1014 = vrot.lane.b32.xlu0 %v938, 120
        %v1015 = vpop.permute.xlu0 %1014
        %1016 = vrot.lane.b32.xlu0 %v938, 88
        %v1017 = vpop.permute.xlu0 %1016
        %v1019 = vsel %vm942, %v1015, 0
        %v1022 = vsel %vm942, %v1017, 0
        %1024 = vmatpush.bf16.xpose.msra.mxu0 0
        %1025 = vmatpush.bf16.xpose.msra.mxu0 0
        %1026 = vmatpush.bf16.xpose.msra.mxu0 0
        %1027 = vmatpush.bf16.xpose.msra.mxu0 0
        %1028 = vmatpush.bf16.xpose.msra.mxu0 0
        %1029 = vmatpush.bf16.xpose.msra.mxu0 0
        %1030 = vmatpush.bf16.xpose.msra.mxu0 0
        %1031 = vmatpush.bf16.xpose.msra.mxu0 %v1022
        %1032 = vmatmul.bf16.gmra.mxu0 %v1019
        %v1033 = vpop.f32.mrf.mxu0
        %v1034 = vadd.f32 0.0, %v1033
        %v1035 = vpop.f32.mrf.mxu0
        %1036 = vdwg.mxu0
        %v1037 = vmul.f32 %v1034, 0.35355338
        %v1038 = vadd.f32 %v1037, %v964
        %v1039 = vsel %vm942, %v1038, -inf
        %1040 = vmax.xlane.f32.xlu0 %v1039
        %v1041 = vpop.xlane.xlu0 %1040
        %v1042 = vsub.f32 %v1038, %v1041
        %v1043 = vmul.f32 %v1042, 1.442695
        %v1044 = vpow.pop %v1043
        %v1045 = vsel %vm942, %v1044, 0.0
        %1046 = vadd.xlane.f32.xlu0 %v1045
        %v1047 = vpop.xlane.xlu0 %1046
        %v1048 = vrcp.pop %v1047
        %v1049 = vmul.f32 %v1047, %v1048
        %v1050 = vsub.f32 1.0, %v1049
        %v1051 = vmul.f32 %v1048, %v1050
        %v1052 = vadd.f32 %v1048, %v1051
        %vm1053 = vweird.f32 %v1047
        %vm1054 = vweird.f32 %v1048
        %vm1055 = vmor %vm1053, %vm1054
        %v1056 = vsel %vm1055, %v1048, %v1052
        %v1057 = vand.u32 2147483647, %v1047
        %vm1058 = vcmp.eq.f32.partialorder %v1057, 8.507059e+37
        %v1059 = vand.u32 %v1047, 2147483648
        %v1060 = vor.u32 1.1754944e-38, %v1059
        %v1061 = vsel %vm1058, %v1060, %v1056
        %v1062 = vmul.f32 %v1044, %v1061
        %v1063 = vpack.c.bf16 %v1062, %v1062
        %1064 = vrot.lane.b32.xlu0 %v938, 56
        %v1065 = vpop.permute.xlu0 %1064
        %v1067 = vsel %vm942, %v1063, 0
        %v1070 = vsel %vm997, %v1065, 0
        %1072 = vmatpush.bf16.msra.mxu0 0
        %1073 = vmatpush.bf16.msra.mxu0 0
        %1074 = vmatpush.bf16.msra.mxu0 0
        %1075 = vmatpush.bf16.msra.mxu0 0
        %1076 = vmatpush.bf16.msra.mxu0 0
        %1077 = vmatpush.bf16.msra.mxu0 0
        %1078 = vmatpush.bf16.msra.mxu0 0
        %1079 = vmatpush.bf16.msra.mxu0 %v1070
        %1080 = vmatmul.bf16.gmra.mxu0 %v1067
        %v1081 = vpop.f32.mrf.mxu0
        %v1082 = vadd.f32 0.0, %v1081
        %v1083 = vpop.f32.mrf.mxu0
        %1084 = vdwg.mxu0
        %1085 = vrot.lane.b32.xlu0 %v938, 112
        %v1086 = vpop.permute.xlu0 %1085
        %1087 = vrot.lane.b32.xlu0 %v938, 80
        %v1088 = vpop.permute.xlu0 %1087
        %v1090 = vsel %vm942, %v1086, 0
        %v1093 = vsel %vm942, %v1088, 0
        %1095 = vmatpush.bf16.xpose.msra.mxu0 0
        %1096 = vmatpush.bf16.xpose.msra.mxu0 0
        %1097 = vmatpush.bf16.xpose.msra.mxu0 0
        %1098 = vmatpush.bf16.xpose.msra.mxu0 0
        %1099 = vmatpush.bf16.xpose.msra.mxu0 0
        %1100 = vmatpush.bf16.xpose.msra.mxu0 0
        %1101 = vmatpush.bf16.xpose.msra.mxu0 0
        %1102 = vmatpush.bf16.xpose.msra.mxu0 %v1093
        %1103 = vmatmul.bf16.gmra.mxu0 %v1090
        %v1104 = vpop.f32.mrf.mxu0
        %v1105 = vadd.f32 0.0, %v1104
        %v1106 = vpop.f32.mrf.mxu0
        %1107 = vdwg.mxu0
        %v1108 = vmul.f32 %v1105, 0.35355338
        %v1109 = vadd.f32 %v1108, %v964
        %v1110 = vsel %vm942, %v1109, -inf
        %1111 = vmax.xlane.f32.xlu0 %v1110
        %v1112 = vpop.xlane.xlu0 %1111
        %v1113 = vsub.f32 %v1109, %v1112
        %v1114 = vmul.f32 %v1113, 1.442695
        %v1115 = vpow.pop %v1114
        %v1116 = vsel %vm942, %v1115, 0.0
        %1117 = vadd.xlane.f32.xlu0 %v1116
        %v1118 = vpop.xlane.xlu0 %1117
        %v1119 = vrcp.pop %v1118
        %v1120 = vmul.f32 %v1118, %v1119
        %v1121 = vsub.f32 1.0, %v1120
        %v1122 = vmul.f32 %v1119, %v1121
        %v1123 = vadd.f32 %v1119, %v1122
        %vm1124 = vweird.f32 %v1118
        %vm1125 = vweird.f32 %v1119
        %vm1126 = vmor %vm1124, %vm1125
        %v1127 = vsel %vm1126, %v1119, %v1123
        %v1128 = vand.u32 2147483647, %v1118
        %vm1129 = vcmp.eq.f32.partialorder %v1128, 8.507059e+37
        %v1130 = vand.u32 %v1118, 2147483648
        %v1131 = vor.u32 1.1754944e-38, %v1130
        %v1132 = vsel %vm1129, %v1131, %v1127
        %v1133 = vmul.f32 %v1115, %v1132
        %v1134 = vpack.c.bf16 %v1133, %v1133
        %1135 = vrot.lane.b32.xlu0 %v938, 48
        %v1136 = vpop.permute.xlu0 %1135
        %v1138 = vsel %vm942, %v1134, 0
        %v1141 = vsel %vm997, %v1136, 0
        %1143 = vmatpush.bf16.msra.mxu0 0
        %1144 = vmatpush.bf16.msra.mxu0 0
        %1145 = vmatpush.bf16.msra.mxu0 0
        %1146 = vmatpush.bf16.msra.mxu0 0
        %1147 = vmatpush.bf16.msra.mxu0 0
        %1148 = vmatpush.bf16.msra.mxu0 0
        %1149 = vmatpush.bf16.msra.mxu0 0
        %1150 = vmatpush.bf16.msra.mxu0 %v1141
        %1151 = vmatmul.bf16.gmra.mxu0 %v1138
        %v1152 = vpop.f32.mrf.mxu0
        %v1153 = vadd.f32 0.0, %v1152
        %v1154 = vpop.f32.mrf.mxu0
        %1155 = vdwg.mxu0
        %1156 = vrot.lane.b32.xlu0 %v938, 104
        %v1157 = vpop.permute.xlu0 %1156
        %1158 = vrot.lane.b32.xlu0 %v938, 72
        %v1159 = vpop.permute.xlu0 %1158
        %v1161 = vsel %vm942, %v1157, 0
        %v1164 = vsel %vm942, %v1159, 0
        %1166 = vmatpush.bf16.xpose.msra.mxu0 0
        %1167 = vmatpush.bf16.xpose.msra.mxu0 0
        %1168 = vmatpush.bf16.xpose.msra.mxu0 0
        %1169 = vmatpush.bf16.xpose.msra.mxu0 0
        %1170 = vmatpush.bf16.xpose.msra.mxu0 0
        %1171 = vmatpush.bf16.xpose.msra.mxu0 0
        %1172 = vmatpush.bf16.xpose.msra.mxu0 0
        %1173 = vmatpush.bf16.xpose.msra.mxu0 %v1164
        %1174 = vmatmul.bf16.gmra.mxu0 %v1161
        %v1175 = vpop.f32.mrf.mxu0
        %v1176 = vadd.f32 0.0, %v1175
        %v1177 = vpop.f32.mrf.mxu0
        %1178 = vdwg.mxu0
        %v1179 = vmul.f32 %v1176, 0.35355338
        %v1180 = vadd.f32 %v1179, %v964
        %v1181 = vsel %vm942, %v1180, -inf
        %1182 = vmax.xlane.f32.xlu0 %v1181
        %v1183 = vpop.xlane.xlu0 %1182
        %v1184 = vsub.f32 %v1180, %v1183
        %v1185 = vmul.f32 %v1184, 1.442695
        %v1186 = vpow.pop %v1185
        %v1187 = vsel %vm942, %v1186, 0.0
        %1188 = vadd.xlane.f32.xlu0 %v1187
        %v1189 = vpop.xlane.xlu0 %1188
        %v1190 = vrcp.pop %v1189
        %v1191 = vmul.f32 %v1189, %v1190
        %v1192 = vsub.f32 1.0, %v1191
        %v1193 = vmul.f32 %v1190, %v1192
        %v1194 = vadd.f32 %v1190, %v1193
        %vm1195 = vweird.f32 %v1189
        %vm1196 = vweird.f32 %v1190
        %vm1197 = vmor %vm1195, %vm1196
        %v1198 = vsel %vm1197, %v1190, %v1194
        %v1199 = vand.u32 2147483647, %v1189
        %vm1200 = vcmp.eq.f32.partialorder %v1199, 8.507059e+37
        %v1201 = vand.u32 %v1189, 2147483648
        %v1202 = vor.u32 1.1754944e-38, %v1201
        %v1203 = vsel %vm1200, %v1202, %v1198
        %v1204 = vmul.f32 %v1186, %v1203
        %v1205 = vpack.c.bf16 %v1204, %v1204
        %1206 = vrot.lane.b32.xlu0 %v938, 40
        %v1207 = vpop.permute.xlu0 %1206
        %v1209 = vsel %vm942, %v1205, 0
        %v1212 = vsel %vm997, %v1207, 0
        %1214 = vmatpush.bf16.msra.mxu0 0
        %1215 = vmatpush.bf16.msra.mxu0 0
        %1216 = vmatpush.bf16.msra.mxu0 0
        %1217 = vmatpush.bf16.msra.mxu0 0
        %1218 = vmatpush.bf16.msra.mxu0 0
        %1219 = vmatpush.bf16.msra.mxu0 0
        %1220 = vmatpush.bf16.msra.mxu0 0
        %1221 = vmatpush.bf16.msra.mxu0 %v1212
        %1222 = vmatmul.bf16.gmra.mxu0 %v1209
        %v1223 = vpop.f32.mrf.mxu0
        %v1224 = vadd.f32 0.0, %v1223
        %v1225 = vpop.f32.mrf.mxu0
        %1226 = vdwg.mxu0
        %1228 = vrot.lane.b32.xlu0 %v1082, 8
        %v1229 = vpop.permute.xlu0 %1228
        %1232 = vrot.lane.b32.xlu0 %v1153, 16
        %v1233 = vpop.permute.xlu0 %1232
        %1236 = vrot.lane.b32.xlu0 %v1224, 24
        %v1237 = vpop.permute.xlu0 %1236
        %v1239 = vsel %vm942, %v1011, %v1229
        %v1240 = vsel %vm830, %v1239, %v1233
        %vm1241 = vcmask 195584
        %v1242 = vsel %vm1241, %v1240, %v1237
        %v1243 = vpack.c.bf16 %v1242, %v1242
        %v1244 = vld [vmem:[%s9] sm:$0xf]
        %v1245 = vld [vmem:[%s9 + $0x4] sm:$0xf]
        %v1246 = vld [vmem:[%s9 + $0x8] sm:$0xf]
        %v1247 = vld [vmem:[%s9 + $0xc] sm:$0xf]
        %v1248 = vld [vmem:[%s10] sm:$0x1]
        %v1250 = vperm.slane %v1248, 0
        %v1256 = vunpack.c.l.b16 %v1244
        %v1257 = vunpack.c.l.b16 %v1245
        %v1258 = vunpack.c.l.b16 %v1246
        %v1259 = vunpack.c.l.b16 %v1247
        %v1260 = vpack.c.b16 %v1257, %v1256
        %v1261 = vpack.c.b16 %v1259, %v1258
        %v1265 = vsel %vm921, %v1243, 0
        %1267 = vmatpush.bf16.msra.mxu0 0
        %1268 = vmatpush.bf16.msra.mxu0 0
        %1269 = vmatpush.bf16.msra.mxu0 0
        %1270 = vmatpush.bf16.msra.mxu0 0
        %1271 = vmatpush.bf16.msra.mxu0 0
        %1272 = vmatpush.bf16.msra.mxu0 0
        %1273 = vmatpush.bf16.msra.mxu0 %v1261
        %1274 = vmatpush.bf16.msra.mxu0 %v1260
        %1275 = vmatmul.bf16.gmra.mxu0 %v1265
        %v1276 = vpop.f32.mrf.mxu0
        %v1277 = vadd.f32 %v1250, %v1276
        %v1278 = vpop.f32.mrf.mxu0
        %1279 = vdwg.mxu0
        %v1280 = vadd.f32 %v896, %v1277
        %v1281 = vsel %vm921, %v1280, 0.0
        %1282 = vadd.xlane.f32.xlu0 %v1281
        %v1283 = vpop.xlane.xlu0 %1282
        %v1284 = vrcp.pop 32.0
        %v1285 = vmul.f32 32.0, %v1284
        %v1286 = vsub.f32 1.0, %v1285
        %v1287 = vmul.f32 %v1284, %v1286
        %v1288 = vadd.f32 %v1284, %v1287
        %vm1289 = vweird.f32 %v1284
        %v1290 = vsel %vm1289, %v1284, %v1288
        %v1291 = vmul.f32 %v1283, %v1290
        %v1292 = vsub.f32 %v1280, %v1291
        %v1293 = vmul.f32 %v1292, %v1292
        %v1294 = vsel %vm921, %v1293, 0.0
        %1295 = vadd.xlane.f32.xlu0 %v1294
        %v1296 = vpop.xlane.xlu0 %1295
        %v1297 = vmul.f32 %v1296, %v1290
        %v1298 = vadd.f32 %v1297, 1e-12
        %v1299 = vrsqrt.pop %v1298
        %v1300 = vmul.f32 %v1299, %v1298
        %v1301 = vmul.f32 %v1300, %v1299
        %v1302 = vmul.f32 0.5, %v1301
        %v1303 = vsub.f32 1.5, %v1302
        %v1304 = vmul.f32 %v1299, %v1303
        %vm1305 = vweird.f32 %v1298
        %vm1306 = vweird.f32 %v1299
        %vm1307 = vmor %vm1305, %vm1306
        %v1308 = vsel %vm1307, %v1299, %v1304
        %v1309 = vmul.f32 %v1292, %v1308
        %v1310 = vld [vmem:[%s11] sm:$0x1]
        %v1312 = vperm.slane %v1310, 0
        %v1314 = vmul.f32 %v1309, %v1312
        %v1315 = vld [vmem:[%s12] sm:$0x1]
        %v1317 = vperm.slane %v1315, 0
        %v1319 = vadd.f32 %v1314, %v1317
        %v1320 = vpack.c.bf16 %v1319, %v1319
        %v1321 = vld [vmem:[%s13] sm:$0xf]
        %v1322 = vld [vmem:[%s13 + $0x4] sm:$0xf]
        %v1323 = vld [vmem:[%s13 + $0x8] sm:$0xf]
        %v1324 = vld [vmem:[%s13 + $0xc] sm:$0xf]
        %v1325 = vld [vmem:[%s14] sm:$0x1]
        %v1327 = vperm.slane %v1325, 0
        %v1333 = vunpack.c.l.b16 %v1321
        %v1334 = vunpack.c.l.b16 %v1322
        %v1335 = vunpack.c.l.b16 %v1323
        %v1336 = vunpack.c.l.b16 %v1324
        %v1337 = vpack.c.b16 %v1334, %v1333
        %v1338 = vpack.c.b16 %v1336, %v1335
        %v1342 = vsel %vm921, %v1320, 0
        %1344 = vmatpush.bf16.msra.mxu0 0
        %1345 = vmatpush.bf16.msra.mxu0 0
        %1346 = vmatpush.bf16.msra.mxu0 0
        %1347 = vmatpush.bf16.msra.mxu0 0
        %1348 = vmatpush.bf16.msra.mxu0 0
        %1349 = vmatpush.bf16.msra.mxu0 0
        %1350 = vmatpush.bf16.msra.mxu0 %v1338
        %1351 = vmatpush.bf16.msra.mxu0 %v1337
        %1352 = vmatmul.bf16.gmra.mxu0 %v1342
        %v1353 = vpop.f32.mrf.mxu0
        %v1354 = vadd.f32 %v1327, %v1353
        %v1355 = vpop.f32.mrf.mxu0
        %1356 = vdwg.mxu0
        %v1357 = vmul.f32 %v1354, %v1354
        %v1358 = vmul.f32 %v1354, %v1357
        %v1359 = vmul.f32 %v1358, 0.044715
        %v1360 = vadd.f32 %v1354, %v1359
        %v1361 = vmul.f32 %v1360, 0.7978846
        %v1362 = vtanh.pop %v1361
        %v1363 = vadd.f32 %v1362, 1.0
        %v1364 = vmul.f32 %v1363, 0.5
        %v1365 = vmul.f32 %v1354, %v1364
        %v1366 = vpack.c.bf16 %v1365, %v1365
        %v1367 = vld [vmem:[%s15] sm:$0xf]
        %v1368 = vld [vmem:[%s15 + $0x4] sm:$0xf]
        %v1369 = vld [vmem:[%s15 + $0x8] sm:$0xf]
        %v1370 = vld [vmem:[%s15 + $0xc] sm:$0xf]
        %v1371 = vld [vmem:[%s15 + $0x10] sm:$0xf]
        %v1372 = vld [vmem:[%s15 + $0x14] sm:$0xf]
        %v1373 = vld [vmem:[%s15 + $0x18] sm:$0xf]
        %v1374 = vld [vmem:[%s15 + $0x1c] sm:$0xf]
        %v1375 = vld [vmem:[%s16] sm:$0x1]
        %v1377 = vperm.slane %v1375, 0
        %v1387 = vunpack.c.l.b16 %v1367
        %v1388 = vunpack.c.l.b16 %v1368
        %v1389 = vunpack.c.l.b16 %v1369
        %v1390 = vunpack.c.l.b16 %v1370
        %v1391 = vunpack.c.l.b16 %v1371
        %v1392 = vunpack.c.l.b16 %v1372
        %v1393 = vunpack.c.l.b16 %v1373
        %v1394 = vunpack.c.l.b16 %v1374
        %v1395 = vpack.c.b16 %v1388, %v1387
        %v1396 = vpack.c.b16 %v1390, %v1389
        %v1397 = vpack.c.b16 %v1392, %v1391
        %v1398 = vpack.c.b16 %v1394, %v1393
        %vm1403 = vcmask 523264
        %v1405 = vsel %vm1403, %v1366, 0
        %1407 = vmatpush.bf16.msra.mxu0 0
        %1408 = vmatpush.bf16.msra.mxu0 0
        %1409 = vmatpush.bf16.msra.mxu0 0
        %1410 = vmatpush.bf16.msra.mxu0 0
        %1411 = vmatpush.bf16.msra.mxu0 %v1398
        %1412 = vmatpush.bf16.msra.mxu0 %v1397
        %1413 = vmatpush.bf16.msra.mxu0 %v1396
        %1414 = vmatpush.bf16.msra.mxu0 %v1395
        %1415 = vmatmul.bf16.gmra.mxu0 %v1405
        %v1416 = vpop.f32.mrf.mxu0
        %v1417 = vadd.f32 %v1377, %v1416
        %v1418 = vpop.f32.mrf.mxu0
        %1419 = vdwg.mxu0
        %v1420 = vadd.f32 %v1319, %v1417
        %v1421 = vsel %vm921, %v1420, 0.0
        %1422 = vadd.xlane.f32.xlu0 %v1421
        %v1423 = vpop.xlane.xlu0 %1422
        %v1424 = vmul.f32 %v1423, %v1290
        %v1425 = vsub.f32 %v1420, %v1424
        %v1426 = vmul.f32 %v1425, %v1425
        %v1427 = vsel %vm921, %v1426, 0.0
        %1428 = vadd.xlane.f32.xlu0 %v1427
        %v1429 = vpop.xlane.xlu0 %1428
        %v1430 = vmul.f32 %v1429, %v1290
        %v1431 = vadd.f32 %v1430, 1e-12
        %v1432 = vrsqrt.pop %v1431
        %v1433 = vmul.f32 %v1432, %v1431
        %v1434 = vmul.f32 %v1433, %v1432
        %v1435 = vmul.f32 0.5, %v1434
        %v1436 = vsub.f32 1.5, %v1435
        %v1437 = vmul.f32 %v1432, %v1436
        %vm1438 = vweird.f32 %v1431
        %vm1439 = vweird.f32 %v1432
        %vm1440 = vmor %vm1438, %vm1439
        %v1441 = vsel %vm1440, %v1432, %v1437
        %v1442 = vmul.f32 %v1425, %v1441
        %v1443 = vld [vmem:[%s17] sm:$0x1]
        %v1445 = vperm.slane %v1443, 0
        %v1447 = vmul.f32 %v1442, %v1445
        %v1448 = vld [vmem:[%s18] sm:$0x1]
        %v1450 = vperm.slane %v1448, 0
        %v1452 = vadd.f32 %v1447, %v1450
        %v1453 = vpack.c.bf16 %v1452, %v1452
        %v1455 = vsel %vm921, %v1453, 0
        %1457 = vmatpush.bf16.msra.mxu0 0
        %1458 = vmatpush.bf16.msra.mxu0 0
        %1459 = vmatpush.bf16.msra.mxu0 0
        %1460 = vmatpush.bf16.msra.mxu0 0
        %1461 = vmatpush.bf16.msra.mxu0 0
        %1462 = vmatpush.bf16.msra.mxu0 0
        %1463 = vmatpush.bf16.msra.mxu0 %v918
        %1464 = vmatpush.bf16.msra.mxu0 %v917
        %1465 = vmatmul.bf16.gmra.mxu0 %v1455
        %v1466 = vpop.f32.mrf.mxu0
        %v1467 = vadd.f32 %v907, %v1466
        %v1468 = vpop.f32.mrf.mxu0
        %1469 = vdwg.mxu0
        %v1470 = vpack.c.bf16 %v1467, %v1467
        %1472 = vrot.lane.b32.xlu0 %v1470, 96
        %v1473 = vpop.permute.xlu0 %1472
        %v1475 = vsel %vm942, %v1470, 0
        %v1478 = vsel %vm942, %v1473, 0
        %1480 = vmatpush.bf16.xpose.msra.mxu0 0
        %1481 = vmatpush.bf16.xpose.msra.mxu0 0
        %1482 = vmatpush.bf16.xpose.msra.mxu0 0
        %1483 = vmatpush.bf16.xpose.msra.mxu0 0
        %1484 = vmatpush.bf16.xpose.msra.mxu0 0
        %1485 = vmatpush.bf16.xpose.msra.mxu0 0
        %1486 = vmatpush.bf16.xpose.msra.mxu0 0
        %1487 = vmatpush.bf16.xpose.msra.mxu0 %v1478
        %1488 = vmatmul.bf16.gmra.mxu0 %v1475
        %v1489 = vpop.f32.mrf.mxu0
        %v1490 = vadd.f32 0.0, %v1489
        %v1491 = vpop.f32.mrf.mxu0
        %1492 = vdwg.mxu0
        %v1493 = vmul.f32 %v1490, 0.35355338
        %v1494 = vadd.f32 %v1493, %v964
        %v1495 = vsel %vm942, %v1494, -inf
        %1496 = vmax.xlane.f32.xlu0 %v1495
        %v1497 = vpop.xlane.xlu0 %1496
        %v1498 = vsub.f32 %v1494, %v1497
        %v1499 = vmul.f32 %v1498, 1.442695
        %v1500 = vpow.pop %v1499
        %v1501 = vsel %vm942, %v1500, 0.0
        %1502 = vadd.xlane.f32.xlu0 %v1501
        %v1503 = vpop.xlane.xlu0 %1502
        %v1504 = vrcp.pop %v1503
        %v1505 = vmul.f32 %v1503, %v1504
        %v1506 = vsub.f32 1.0, %v1505
        %v1507 = vmul.f32 %v1504, %v1506
        %v1508 = vadd.f32 %v1504, %v1507
        %vm1509 = vweird.f32 %v1503
        %vm1510 = vweird.f32 %v1504
        %vm1511 = vmor %vm1509, %vm1510
        %v1512 = vsel %vm1511, %v1504, %v1508
        %v1513 = vand.u32 2147483647, %v1503
        %vm1514 = vcmp.eq.f32.partialorder %v1513, 8.507059e+37
        %v1515 = vand.u32 %v1503, 2147483648
        %v1516 = vor.u32 1.1754944e-38, %v1515
        %v1517 = vsel %vm1514, %v1516, %v1512
        %v1518 = vmul.f32 %v1500, %v1517
        %v1519 = vpack.c.bf16 %v1518, %v1518
        %1520 = vrot.lane.b32.xlu0 %v1470, 64
        %v1521 = vpop.permute.xlu0 %1520
        %v1523 = vsel %vm942, %v1519, 0
        %v1526 = vsel %vm997, %v1521, 0
        %1528 = vmatpush.bf16.msra.mxu0 0
        %1529 = vmatpush.bf16.msra.mxu0 0
        %1530 = vmatpush.bf16.msra.mxu0 0
        %1531 = vmatpush.bf16.msra.mxu0 0
        %1532 = vmatpush.bf16.msra.mxu0 0
        %1533 = vmatpush.bf16.msra.mxu0 0
        %1534 = vmatpush.bf16.msra.mxu0 0
        %1535 = vmatpush.bf16.msra.mxu0 %v1526
        %1536 = vmatmul.bf16.gmra.mxu0 %v1523
        %v1537 = vpop.f32.mrf.mxu0
        %v1538 = vadd.f32 0.0, %v1537
        %v1539 = vpop.f32.mrf.mxu0
        %1540 = vdwg.mxu0
        %1541 = vrot.lane.b32.xlu0 %v1470, 120
        %v1542 = vpop.permute.xlu0 %1541
        %1543 = vrot.lane.b32.xlu0 %v1470, 88
        %v1544 = vpop.permute.xlu0 %1543
        %v1546 = vsel %vm942, %v1542, 0
        %v1549 = vsel %vm942, %v1544, 0
        %1551 = vmatpush.bf16.xpose.msra.mxu0 0
        %1552 = vmatpush.bf16.xpose.msra.mxu0 0
        %1553 = vmatpush.bf16.xpose.msra.mxu0 0
        %1554 = vmatpush.bf16.xpose.msra.mxu0 0
        %1555 = vmatpush.bf16.xpose.msra.mxu0 0
        %1556 = vmatpush.bf16.xpose.msra.mxu0 0
        %1557 = vmatpush.bf16.xpose.msra.mxu0 0
        %1558 = vmatpush.bf16.xpose.msra.mxu0 %v1549
        %1559 = vmatmul.bf16.gmra.mxu0 %v1546
        %v1560 = vpop.f32.mrf.mxu0
        %v1561 = vadd.f32 0.0, %v1560
        %v1562 = vpop.f32.mrf.mxu0
        %1563 = vdwg.mxu0
        %v1564 = vmul.f32 %v1561, 0.35355338
        %v1565 = vadd.f32 %v1564, %v964
        %v1566 = vsel %vm942, %v1565, -inf
        %1567 = vmax.xlane.f32.xlu0 %v1566
        %v1568 = vpop.xlane.xlu0 %1567
        %v1569 = vsub.f32 %v1565, %v1568
        %v1570 = vmul.f32 %v1569, 1.442695
        %v1571 = vpow.pop %v1570
        %v1572 = vsel %vm942, %v1571, 0.0
        %1573 = vadd.xlane.f32.xlu0 %v1572
        %v1574 = vpop.xlane.xlu0 %1573
        %v1575 = vrcp.pop %v1574
        %v1576 = vmul.f32 %v1574, %v1575
        %v1577 = vsub.f32 1.0, %v1576
        %v1578 = vmul.f32 %v1575, %v1577
        %v1579 = vadd.f32 %v1575, %v1578
        %vm1580 = vweird.f32 %v1574
        %vm1581 = vweird.f32 %v1575
        %vm1582 = vmor %vm1580, %vm1581
        %v1583 = vsel %vm1582, %v1575, %v1579
        %v1584 = vand.u32 2147483647, %v1574
        %vm1585 = vcmp.eq.f32.partialorder %v1584, 8.507059e+37
        %v1586 = vand.u32 %v1574, 2147483648
        %v1587 = vor.u32 1.1754944e-38, %v1586
        %v1588 = vsel %vm1585, %v1587, %v1583
        %v1589 = vmul.f32 %v1571, %v1588
        %v1590 = vpack.c.bf16 %v1589, %v1589
        %1591 = vrot.lane.b32.xlu0 %v1470, 56
        %v1592 = vpop.permute.xlu0 %1591
        %v1594 = vsel %vm942, %v1590, 0
        %v1597 = vsel %vm997, %v1592, 0
        %1599 = vmatpush.bf16.msra.mxu0 0
        %1600 = vmatpush.bf16.msra.mxu0 0
        %1601 = vmatpush.bf16.msra.mxu0 0
        %1602 = vmatpush.bf16.msra.mxu0 0
        %1603 = vmatpush.bf16.msra.mxu0 0
        %1604 = vmatpush.bf16.msra.mxu0 0
        %1605 = vmatpush.bf16.msra.mxu0 0
        %1606 = vmatpush.bf16.msra.mxu0 %v1597
        %1607 = vmatmul.bf16.gmra.mxu0 %v1594
        %v1608 = vpop.f32.mrf.mxu0
        %v1609 = vadd.f32 0.0, %v1608
        %v1610 = vpop.f32.mrf.mxu0
        %1611 = vdwg.mxu0
        %1612 = vrot.lane.b32.xlu0 %v1470, 112
        %v1613 = vpop.permute.xlu0 %1612
        %1614 = vrot.lane.b32.xlu0 %v1470, 80
        %v1615 = vpop.permute.xlu0 %1614
        %v1617 = vsel %vm942, %v1613, 0
        %v1620 = vsel %vm942, %v1615, 0
        %1622 = vmatpush.bf16.xpose.msra.mxu0 0
        %1623 = vmatpush.bf16.xpose.msra.mxu0 0
        %1624 = vmatpush.bf16.xpose.msra.mxu0 0
        %1625 = vmatpush.bf16.xpose.msra.mxu0 0
        %1626 = vmatpush.bf16.xpose.msra.mxu0 0
        %1627 = vmatpush.bf16.xpose.msra.mxu0 0
        %1628 = vmatpush.bf16.xpose.msra.mxu0 0
        %1629 = vmatpush.bf16.xpose.msra.mxu0 %v1620
        %1630 = vmatmul.bf16.gmra.mxu0 %v1617
        %v1631 = vpop.f32.mrf.mxu0
        %v1632 = vadd.f32 0.0, %v1631
        %v1633 = vpop.f32.mrf.mxu0
        %1634 = vdwg.mxu0
        %v1635 = vmul.f32 %v1632, 0.35355338
        %v1636 = vadd.f32 %v1635, %v964
        %v1637 = vsel %vm942, %v1636, -inf
        %1638 = vmax.xlane.f32.xlu0 %v1637
        %v1639 = vpop.xlane.xlu0 %1638
        %v1640 = vsub.f32 %v1636, %v1639
        %v1641 = vmul.f32 %v1640, 1.442695
        %v1642 = vpow.pop %v1641
        %v1643 = vsel %vm942, %v1642, 0.0
        %1644 = vadd.xlane.f32.xlu0 %v1643
        %v1645 = vpop.xlane.xlu0 %1644
        %v1646 = vrcp.pop %v1645
        %v1647 = vmul.f32 %v1645, %v1646
        %v1648 = vsub.f32 1.0, %v1647
        %v1649 = vmul.f32 %v1646, %v1648
        %v1650 = vadd.f32 %v1646, %v1649
        %vm1651 = vweird.f32 %v1645
        %vm1652 = vweird.f32 %v1646
        %vm1653 = vmor %vm1651, %vm1652
        %v1654 = vsel %vm1653, %v1646, %v1650
        %v1655 = vand.u32 2147483647, %v1645
        %vm1656 = vcmp.eq.f32.partialorder %v1655, 8.507059e+37
        %v1657 = vand.u32 %v1645, 2147483648
        %v1658 = vor.u32 1.1754944e-38, %v1657
        %v1659 = vsel %vm1656, %v1658, %v1654
        %v1660 = vmul.f32 %v1642, %v1659
        %v1661 = vpack.c.bf16 %v1660, %v1660
        %1662 = vrot.lane.b32.xlu0 %v1470, 48
        %v1663 = vpop.permute.xlu0 %1662
        %v1665 = vsel %vm942, %v1661, 0
        %v1668 = vsel %vm997, %v1663, 0
        %1670 = vmatpush.bf16.msra.mxu0 0
        %1671 = vmatpush.bf16.msra.mxu0 0
        %1672 = vmatpush.bf16.msra.mxu0 0
        %1673 = vmatpush.bf16.msra.mxu0 0
        %1674 = vmatpush.bf16.msra.mxu0 0
        %1675 = vmatpush.bf16.msra.mxu0 0
        %1676 = vmatpush.bf16.msra.mxu0 0
        %1677 = vmatpush.bf16.msra.mxu0 %v1668
        %1678 = vmatmul.bf16.gmra.mxu0 %v1665
        %v1679 = vpop.f32.mrf.mxu0
        %v1680 = vadd.f32 0.0, %v1679
        %v1681 = vpop.f32.mrf.mxu0
        %1682 = vdwg.mxu0
        %1683 = vrot.lane.b32.xlu0 %v1470, 104
        %v1684 = vpop.permute.xlu0 %1683
        %1685 = vrot.lane.b32.xlu0 %v1470, 72
        %v1686 = vpop.permute.xlu0 %1685
        %v1688 = vsel %vm942, %v1684, 0
        %v1691 = vsel %vm942, %v1686, 0
        %1693 = vmatpush.bf16.xpose.msra.mxu0 0
        %1694 = vmatpush.bf16.xpose.msra.mxu0 0
        %1695 = vmatpush.bf16.xpose.msra.mxu0 0
        %1696 = vmatpush.bf16.xpose.msra.mxu0 0
        %1697 = vmatpush.bf16.xpose.msra.mxu0 0
        %1698 = vmatpush.bf16.xpose.msra.mxu0 0
        %1699 = vmatpush.bf16.xpose.msra.mxu0 0
        %1700 = vmatpush.bf16.xpose.msra.mxu0 %v1691
        %1701 = vmatmul.bf16.gmra.mxu0 %v1688
        %v1702 = vpop.f32.mrf.mxu0
        %v1703 = vadd.f32 0.0, %v1702
        %v1704 = vpop.f32.mrf.mxu0
        %1705 = vdwg.mxu0
        %v1706 = vmul.f32 %v1703, 0.35355338
        %v1707 = vadd.f32 %v1706, %v964
        %v1708 = vsel %vm942, %v1707, -inf
        %1709 = vmax.xlane.f32.xlu0 %v1708
        %v1710 = vpop.xlane.xlu0 %1709
        %v1711 = vsub.f32 %v1707, %v1710
        %v1712 = vmul.f32 %v1711, 1.442695
        %v1713 = vpow.pop %v1712
        %v1714 = vsel %vm942, %v1713, 0.0
        %1715 = vadd.xlane.f32.xlu0 %v1714
        %v1716 = vpop.xlane.xlu0 %1715
        %v1717 = vrcp.pop %v1716
        %v1718 = vmul.f32 %v1716, %v1717
        %v1719 = vsub.f32 1.0, %v1718
        %v1720 = vmul.f32 %v1717, %v1719
        %v1721 = vadd.f32 %v1717, %v1720
        %vm1722 = vweird.f32 %v1716
        %vm1723 = vweird.f32 %v1717
        %vm1724 = vmor %vm1722, %vm1723
        %v1725 = vsel %vm1724, %v1717, %v1721
        %v1726 = vand.u32 2147483647, %v1716
        %vm1727 = vcmp.eq.f32.partialorder %v1726, 8.507059e+37
        %v1728 = vand.u32 %v1716, 2147483648
        %v1729 = vor.u32 1.1754944e-38, %v1728
        %v1730 = vsel %vm1727, %v1729, %v1725
        %v1731 = vmul.f32 %v1713, %v1730
        %v1732 = vpack.c.bf16 %v1731, %v1731
        %1733 = vrot.lane.b32.xlu0 %v1470, 40
        %v1734 = vpop.permute.xlu0 %1733
        %v1736 = vsel %vm942, %v1732, 0
        %v1739 = vsel %vm997, %v1734, 0
        %1741 = vmatpush.bf16.msra.mxu0 0
        %1742 = vmatpush.bf16.msra.mxu0 0
        %1743 = vmatpush.bf16.msra.mxu0 0
        %1744 = vmatpush.bf16.msra.mxu0 0
        %1745 = vmatpush.bf16.msra.mxu0 0
        %1746 = vmatpush.bf16.msra.mxu0 0
        %1747 = vmatpush.bf16.msra.mxu0 0
        %1748 = vmatpush.bf16.msra.mxu0 %v1739
        %1749 = vmatmul.bf16.gmra.mxu0 %v1736
        %v1750 = vpop.f32.mrf.mxu0
        %v1751 = vadd.f32 0.0, %v1750
        %v1752 = vpop.f32.mrf.mxu0
        %1753 = vdwg.mxu0
        %1755 = vrot.lane.b32.xlu0 %v1609, 8
        %v1756 = vpop.permute.xlu0 %1755
        %1759 = vrot.lane.b32.xlu0 %v1680, 16
        %v1760 = vpop.permute.xlu0 %1759
        %1763 = vrot.lane.b32.xlu0 %v1751, 24
        %v1764 = vpop.permute.xlu0 %1763
        %v1766 = vsel %vm942, %v1538, %v1756
        %v1767 = vsel %vm830, %v1766, %v1760
        %v1768 = vsel %vm1241, %v1767, %v1764
        %v1769 = vpack.c.bf16 %v1768, %v1768
        %v1771 = vsel %vm921, %v1769, 0
        %1773 = vmatpush.bf16.msra.mxu0 0
        %1774 = vmatpush.bf16.msra.mxu0 0
        %1775 = vmatpush.bf16.msra.mxu0 0
        %1776 = vmatpush.bf16.msra.mxu0 0
        %1777 = vmatpush.bf16.msra.mxu0 0
        %1778 = vmatpush.bf16.msra.mxu0 0
        %1779 = vmatpush.bf16.msra.mxu0 %v1261
        %1780 = vmatpush.bf16.msra.mxu0 %v1260
        %1781 = vmatmul.bf16.gmra.mxu0 %v1771
        %v1782 = vpop.f32.mrf.mxu0
        %v1783 = vadd.f32 %v1250, %v1782
        %v1784 = vpop.f32.mrf.mxu0
        %1785 = vdwg.mxu0
        %v1786 = vadd.f32 %v1452, %v1783
        %v1787 = vsel %vm921, %v1786, 0.0
        %1788 = vadd.xlane.f32.xlu0 %v1787
        %v1789 = vpop.xlane.xlu0 %1788
        %v1790 = vmul.f32 %v1789, %v1290
        %v1791 = vsub.f32 %v1786, %v1790
        %v1792 = vmul.f32 %v1791, %v1791
        %v1793 = vsel %vm921, %v1792, 0.0
        %1794 = vadd.xlane.f32.xlu0 %v1793
        %v1795 = vpop.xlane.xlu0 %1794
        %v1796 = vmul.f32 %v1795, %v1290
        %v1797 = vadd.f32 %v1796, 1e-12
        %v1798 = vrsqrt.pop %v1797
        %v1799 = vmul.f32 %v1798, %v1797
        %v1800 = vmul.f32 %v1799, %v1798
        %v1801 = vmul.f32 0.5, %v1800
        %v1802 = vsub.f32 1.5, %v1801
        %v1803 = vmul.f32 %v1798, %v1802
        %vm1804 = vweird.f32 %v1797
        %vm1805 = vweird.f32 %v1798
        %vm1806 = vmor %vm1804, %vm1805
        %v1807 = vsel %vm1806, %v1798, %v1803
        %v1808 = vmul.f32 %v1791, %v1807
        %v1809 = vmul.f32 %v1808, %v1312
        %v1810 = vadd.f32 %v1809, %v1317
        %v1811 = vpack.c.bf16 %v1810, %v1810
        %v1813 = vsel %vm921, %v1811, 0
        %1815 = vmatpush.bf16.msra.mxu0 0
        %1816 = vmatpush.bf16.msra.mxu0 0
        %1817 = vmatpush.bf16.msra.mxu0 0
        %1818 = vmatpush.bf16.msra.mxu0 0
        %1819 = vmatpush.bf16.msra.mxu0 0
        %1820 = vmatpush.bf16.msra.mxu0 0
        %1821 = vmatpush.bf16.msra.mxu0 %v1338
        %1822 = vmatpush.bf16.msra.mxu0 %v1337
        %1823 = vmatmul.bf16.gmra.mxu0 %v1813
        %v1824 = vpop.f32.mrf.mxu0
        %v1825 = vadd.f32 %v1327, %v1824
        %v1826 = vpop.f32.mrf.mxu0
        %1827 = vdwg.mxu0
        %v1828 = vmul.f32 %v1825, %v1825
        %v1829 = vmul.f32 %v1825, %v1828
        %v1830 = vmul.f32 %v1829, 0.044715
        %v1831 = vadd.f32 %v1825, %v1830
        %v1832 = vmul.f32 %v1831, 0.7978846
        %v1833 = vtanh.pop %v1832
        %v1834 = vadd.f32 %v1833, 1.0
        %v1835 = vmul.f32 %v1834, 0.5
        %v1836 = vmul.f32 %v1825, %v1835
        %v1837 = vpack.c.bf16 %v1836, %v1836
        %v1839 = vsel %vm1403, %v1837, 0
        %1841 = vmatpush.bf16.msra.mxu0 0
        %1842 = vmatpush.bf16.msra.mxu0 0
        %1843 = vmatpush.bf16.msra.mxu0 0
        %1844 = vmatpush.bf16.msra.mxu0 0
        %1845 = vmatpush.bf16.msra.mxu0 %v1398
        %1846 = vmatpush.bf16.msra.mxu0 %v1397
        %1847 = vmatpush.bf16.msra.mxu0 %v1396
        %1848 = vmatpush.bf16.msra.mxu0 %v1395
        %1849 = vmatmul.bf16.gmra.mxu0 %v1839
        %v1850 = vpop.f32.mrf.mxu0
        %v1851 = vadd.f32 %v1377, %v1850
        %v1852 = vpop.f32.mrf.mxu0
        %1853 = vdwg.mxu0
        %v1854 = vadd.f32 %v1810, %v1851
        %v1855 = vsel %vm921, %v1854, 0.0
        %1856 = vadd.xlane.f32.xlu0 %v1855
        %v1857 = vpop.xlane.xlu0 %1856
        %v1858 = vmul.f32 %v1857, %v1290
        %v1859 = vsub.f32 %v1854, %v1858
        %v1860 = vmul.f32 %v1859, %v1859
        %v1861 = vsel %vm921, %v1860, 0.0
        %1862 = vadd.xlane.f32.xlu0 %v1861
        %v1863 = vpop.xlane.xlu0 %1862
        %v1864 = vmul.f32 %v1863, %v1290
        %v1865 = vadd.f32 %v1864, 1e-12
        %v1866 = vrsqrt.pop %v1865
        %v1867 = vmul.f32 %v1866, %v1865
        %v1868 = vmul.f32 %v1867, %v1866
        %v1869 = vmul.f32 0.5, %v1868
        %v1870 = vsub.f32 1.5, %v1869
        %v1871 = vmul.f32 %v1866, %v1870
        %vm1872 = vweird.f32 %v1865
        %vm1873 = vweird.f32 %v1866
        %vm1874 = vmor %vm1872, %vm1873
        %v1875 = vsel %vm1874, %v1866, %v1871
        %v1876 = vmul.f32 %v1859, %v1875
        %v1877 = vmul.f32 %v1876, %v1445
        %v1878 = vadd.f32 %v1877, %v1450
        %v1879 = vpack.c.bf16 %v1878, %v1878
        %v1880 = vld [vmem:[%s19] sm:$0xf]
        %v1881 = vld [vmem:[%s19 + $0x4] sm:$0xf]
        %v1882 = vld [vmem:[%s19 + $0x8] sm:$0xf]
        %v1883 = vld [vmem:[%s19 + $0xc] sm:$0xf]
        %v1884 = vld [vmem:[%s20] sm:$0x1]
        %v1889 = vunpack.c.l.b16 %v1880
        %v1890 = vunpack.c.l.b16 %v1881
        %v1891 = vunpack.c.l.b16 %v1882
        %v1892 = vunpack.c.l.b16 %v1883
        %v1893 = vpack.c.b16 %v1890, %v1889
        %v1894 = vpack.c.b16 %v1892, %v1891
        %v1898 = vsel %vm921, %v1879, 0
        %1900 = vmatpush.bf16.msra.mxu0 0
        %1901 = vmatpush.bf16.msra.mxu0 0
        %1902 = vmatpush.bf16.msra.mxu0 0
        %1903 = vmatpush.bf16.msra.mxu0 0
        %1904 = vmatpush.bf16.msra.mxu0 0
        %1905 = vmatpush.bf16.msra.mxu0 0
        %1906 = vmatpush.bf16.msra.mxu0 %v1894
        %1907 = vmatpush.bf16.msra.mxu0 %v1893
        %1908 = vmatmul.bf16.gmra.mxu0 %v1898
        %v1909 = vpop.f32.mrf.mxu0
        %v1910 = vadd.f32 %v1884, %v1909
        %v1911 = vpop.f32.mrf.mxu0
        %1912 = vdwg.mxu0
        %v1913 = vtanh.pop %v1910
        %v1914 = vpack.c.bf16 %v1913, %v1913
        %v1915 = vld [vmem:[%s21] sm:$0xf]
        %v1916 = vld [vmem:[%s21 + $0x4] sm:$0xf]
        %v1917 = vld [vmem:[%s21 + $0x8] sm:$0xf]
        %v1918 = vld [vmem:[%s21 + $0xc] sm:$0xf]
        %v1919 = vld [vmem:[%s22] sm:$0x1]
        %v1924 = vunpack.c.l.b16 %v1915
        %v1925 = vunpack.c.l.b16 %v1916
        %v1926 = vunpack.c.l.b16 %v1917
        %v1927 = vunpack.c.l.b16 %v1918
        %v1928 = vpack.c.b16 %v1925, %v1924
        %v1929 = vpack.c.b16 %v1927, %v1926
        %v1933 = vsel %vm921, %v1914, 0
        %1935 = vmatpush.bf16.msra.mxu0 0
        %1936 = vmatpush.bf16.msra.mxu0 0
        %1937 = vmatpush.bf16.msra.mxu0 0
        %1938 = vmatpush.bf16.msra.mxu0 0
        %1939 = vmatpush.bf16.msra.mxu0 0
        %1940 = vmatpush.bf16.msra.mxu0 0
        %1941 = vmatpush.bf16.msra.mxu0 %v1929
        %1942 = vmatpush.bf16.msra.mxu0 %v1928
        %1943 = vmatmul.bf16.gmra.mxu0 %v1933
        %v1944 = vpop.f32.mrf.mxu0
        %v1945 = vadd.f32 %v1919, %v1944
        %v1946 = vpop.f32.mrf.mxu0
        %1947 = vdwg.mxu0
        %1948 = vst [vmem:[%s806] sm:$0x1] %v1945
        %v1949 = vld [vmem:[%s823] sm:$0xff]
        %v1950 = vld [vmem:[%s23] sm:$0xf]
        %v1951 = vld [vmem:[%s23 + $0x4] sm:$0xf]
        %v1952 = vld [vmem:[%s23 + $0x8] sm:$0xf]
        %v1953 = vld [vmem:[%s23 + $0xc] sm:$0xf]
        %v1954 = vld [vmem:[%s24] sm:$0x1]
        %v1956 = vperm.slane %v1954, 0
        %v1962 = vunpack.c.l.b16 %v1950
        %v1963 = vunpack.c.l.b16 %v1951
        %v1964 = vunpack.c.l.b16 %v1952
        %v1965 = vunpack.c.l.b16 %v1953
        %v1966 = vpack.c.b16 %v1963, %v1962
        %v1967 = vpack.c.b16 %v1965, %v1964
        %1970 = vmatpush.bf16.msra.mxu0 0
        %1971 = vmatpush.bf16.msra.mxu0 0
        %1972 = vmatpush.bf16.msra.mxu0 0
        %1973 = vmatpush.bf16.msra.mxu0 0
        %1974 = vmatpush.bf16.msra.mxu0 0
        %1975 = vmatpush.bf16.msra.mxu0 0
        %1976 = vmatpush.bf16.msra.mxu0 %v1967
        %1977 = vmatpush.bf16.msra.mxu0 %v1966
        %1978 = vmatmul.bf16.gmra.mxu0 %v1898
        %v1979 = vpop.f32.mrf.mxu0
        %v1980 = vadd.f32 %v1956, %v1979
        %v1981 = vpop.f32.mrf.mxu0
        %1982 = vdwg.mxu0
        %1984 = vset.pattern.permute.xlu0 0
        %1985 = vperm.xlu0 %1984, %v1949
        %v1986 = vpop.permute.xlu0 %1985
        %v1988 = vadd.f32 %v1980, %v1986
        %1989 = vst [vmem:[%s827] sm:$0xff] %v1988
        %s1990 = sand.u32 %s589, 1
        %s1991 = scalar_lea.sflag [#allocation3], %s1990
        %s1992 = sand.u32 %s589, 1
        %s1993 = scalar_lea.vmem [#allocation2], %s1992
        %p1994 = scmp.lt.s32.totalorder %s41, 1
        %s1995 = scalar_select %p1994, %s41, 1
        %s1996 = smul.addr %s1995, 8
        %s1997 = scalar_lea.vmem %s26, %s1996
        // Predicated region
        $region121: #{tag_value_forward.1} parent=119 // pred_check
          %p1998 = pneg %p599
        $region122: #{tag_value_forward.1} parent=119 // pred_check_branch
          %2000 = sbr.rel (%p1998) target = $region124
        $region123: #{tag_value_forward.1} parent=119 // pred_region
          %2002 = vsyncadd %s1991, 0
          %s2003 = scalar_lea.hbm %s25, %s41
          %s2005 = sshll.u32 %s1993, 4
          %s2006 = int_to_ptr.vmem [resolvable:$true] %s2005
          %s2007 = sshll.u32 %s2003, 4
          %s2008 = int_to_ptr.hbm [resolvable:$true] %s2007
          %2010 = dma.vmem_to_hbm [thread:$0]  %s2006, 16, %s2008, %s1991
        $region124: #{tag_value_forward.1} parent=119 // pred_fallthru
          _
        // Predicated region
        $region125: #{tag_value_forward.1} parent=119 // pred_check
          %p2011 = pneg %p625
        $region126: #{tag_value_forward.1} parent=119 // pred_check_branch
          %2013 = sbr.rel (%p2011) target = $region128
        $region127: #{tag_value_forward.1} parent=119 // pred_region
          _
        $region128: #{tag_value_forward.1} parent=119 // pred_fallthru
          _
      $region120: #{tag_value_forward.1} parent=5 // pred_fallthru
        _
      %p2014 = scmp.le.s32.totalorder 2, %s36
      // Predicated region
      $region129: #{tag_value_forward.1} parent=5 // pred_check
        %p2015 = pneg %p2014
      $region130: #{tag_value_forward.1} parent=5 // pred_check_branch
        %2017 = sbr.rel (%p2015) target = $region132
      $region131: #{tag_value_forward.1} parent=5 // pred_region
        %s2018 = ssub.s32 %s36, 2
        // Predicated region
        $region133: #{tag_value_forward.1} parent=131 // pred_check
          %p2019 = pneg %p605
        $region134: #{tag_value_forward.1} parent=131 // pred_check_branch
          %2021 = sbr.rel (%p2019) target = $region136
        $region135: #{tag_value_forward.1} parent=131 // pred_region
          %s2022 = sand.u32 %s590, 1
          %s2023 = scalar_lea.sflag [#allocation3], %s2022
          %s2024 = sand.u32 %s590, 1
          %s2025 = scalar_lea.vmem [#allocation2], %s2024
          %2027 = dma.done %s2023, 16
        $region136: #{tag_value_forward.1} parent=131 // pred_fallthru
          _
        // Predicated region
        $region137: #{tag_value_forward.1} parent=131 // pred_check
          %p2028 = pneg %p631
        $region138: #{tag_value_forward.1} parent=131 // pred_check_branch
          %2030 = sbr.rel (%p2028) target = $region140
        $region139: #{tag_value_forward.1} parent=131 // pred_region
          %p2031 = scmp.lt.s32.totalorder %s42, 1
          %s2032 = scalar_select %p2031, %s42, 1
          %s2033 = smul.addr %s2032, 8
          %s2034 = scalar_lea.vmem %s26, %s2033
        $region140: #{tag_value_forward.1} parent=131 // pred_fallthru
          _
      $region132: #{tag_value_forward.1} parent=5 // pred_fallthru
        _
    $region6: #{tag_value_forward.1} parent=1 // loop_footer
      %s40 = sadd.s32 1, %s36
    $region7: #{tag_value_forward.1} parent=1 // loop_footer_branch
      %35 = sbr.rel target = $region3
    $region8: #{tag_value_forward.1} parent=1 // loop_exit
      _
    %2035 = vsyncpa [#allocation3], 1
    %s2036 = scalar_lea.sflag [#allocation3], 1
    %2037 = vsyncpa %s2036, 1

</llo_original>
